<compile_context>
chip_gen: v6e
topology: v6e:2x2x1
jax: 0.10.0
libtpu: 0.0.40
codegen_flags: <defaults>
</compile_context>

<pallas_src>
import functools

import jax
import jax.numpy as jnp
from jax.experimental import pallas as pl
from jax.experimental.pallas import tpu as pltpu


# Approximate EUP reciprocal for the softmax denominator (fast; ~1e-3/1e-4
# relative error vs. exact divide -> outputs won't bit-match a PyTorch ref).
_APPROX_RECIPROCAL = True


# ---------------------------------------------------------------------------
# Small helpers
# ---------------------------------------------------------------------------

@functools.lru_cache(maxsize=1)
def _vmem_limit_bytes():
    """Per-generation VMEM budget: ~60% of physical VMEM.

    ~38 MiB on v7x (64 MiB physical), ~76 MiB on v5e/v6e (128 MiB physical).
    """
    cap = 64 * 1024 * 1024
    try:
        cap = int(pltpu.get_tpu_info().vmem_capacity_bytes)
    except Exception:
        pass
    return min(int(cap * 0.6), 96 * 1024 * 1024)


def _round_up(x, m):
    return ((x + m - 1) // m) * m


def _row_tile(m):
    """Largest row tile (<=512, multiple of 8) that divides the 8-rounded row count.

    Choosing a divisor avoids per-call pad/slice HBM copies in the common case.
    """
    mp = _round_up(max(m, 8), 8)
    for t in (512, 256, 128, 64, 32, 16, 8):
        if t <= mp and mp % t == 0:
            return t, mp
    return mp, mp


def _ff_tile(f):
    """Tile for the ff_dim reduction axis (keeps FFN weights off-resident)."""
    for t in (512, 256, 128):
        if f % t == 0 and t < f:
            return t
    return f


def _softmax_rows(s):
    s = s - jnp.max(s, axis=-1, keepdims=True)
    p = jnp.exp(s)
    denom = jnp.sum(p, axis=-1, keepdims=True)
    if _APPROX_RECIPROCAL:
        return p * pl.reciprocal(denom, approx=True)
    return p / denom


def _layernorm_rows(h, g, b, eps):
    mean = jnp.mean(h, axis=-1, keepdims=True)
    var = jnp.mean((h - mean) * (h - mean), axis=-1, keepdims=True)
    return (h - mean) * jax.lax.rsqrt(var + eps) * g + b


# ---------------------------------------------------------------------------
# Pallas kernels
# ---------------------------------------------------------------------------

def _attn_block_kernel(*refs, dh, scale, eps, use_mask):
    """Fused attention sub-block.  Grid = (batch, heads).

    Per (b, h) step: project this head's q/k/v, do scaled-dot-product attention,
    and accumulate `attn_h @ Wo[h]` into a (T, D) f32 scratch.  Head 0 seeds the
    scratch with the residual + output-projection bias; the last head applies
    LayerNorm and stores the (T, D) result (lane-dense on D).
    """
    if use_mask:
        (q_ref, kv_ref, wqkv_ref, bqkv_ref, wo_ref, bo_ref,
         g_ref, b_ref, mask_ref, o_ref, acc_ref) = refs
    else:
        (q_ref, kv_ref, wqkv_ref, bqkv_ref, wo_ref, bo_ref,
         g_ref, b_ref, o_ref, acc_ref) = refs

    h_idx = pl.program_id(1)

    @pl.when(h_idx == 0)
    def _init():
        # residual + output-projection bias (added exactly once)
        acc_ref[...] = q_ref[...].astype(jnp.float32) + bo_ref[...]

    x = q_ref[...].astype(jnp.bfloat16)           # (T, D)  bf16 MXU operands
    src = kv_ref[...].astype(jnp.bfloat16)        # (S, D)
    w = wqkv_ref[...]                             # (D, 3*dh)  bf16, [wq|wk|wv]
    bqkv = bqkv_ref[...]                          # (1, 3*dh)  f32

    q = (jnp.dot(x, w[:, :dh], preferred_element_type=jnp.float32)
         + bqkv[:, :dh]) * scale                                          # (T, dh)
    k = (jnp.dot(src, w[:, dh:2 * dh], preferred_element_type=jnp.float32)
         + bqkv[:, dh:2 * dh])                                            # (S, dh)
    v = (jnp.dot(src, w[:, 2 * dh:], preferred_element_type=jnp.float32)
         + bqkv[:, 2 * dh:])                                              # (S, dh)

    s = jax.lax.dot_general(q.astype(jnp.bfloat16), k.astype(jnp.bfloat16),
                            (((1,), (1,)), ((), ())),
                            preferred_element_type=jnp.float32)           # (T, S)
    if use_mask:
        s = s + mask_ref[...]
    p = _softmax_rows(s)                                                  # f32
    att = jnp.dot(p.astype(jnp.bfloat16), v.astype(jnp.bfloat16),
                  preferred_element_type=jnp.float32)                     # (T, dh)

    # Per-head slice of the output projection, accumulated directly (no concat).
    acc_ref[...] += jnp.dot(att.astype(jnp.bfloat16), wo_ref[...],
                            preferred_element_type=jnp.float32)           # (T, D)

    @pl.when(h_idx == pl.num_programs(1) - 1)
    def _finalize():
        o_ref[...] = _layernorm_rows(acc_ref[...], g_ref[...], b_ref[...],
                                     eps).astype(o_ref.dtype)
    # TODO(synk): for long sequences, tile T/S as well (flash-style online
    # softmax) instead of holding full (S, D) k/v and (T, S) scores in VMEM.


def _ffn_add_ln_kernel(x_ref, w1_ref, b1_ref, w2_ref, b2_ref, g_ref, b_ref,
                       o_ref, acc_ref, *, eps):
    """LayerNorm(x + relu(x@W1+b1)@W2 + b2), F tiled as a reduction grid axis."""
    j = pl.program_id(1)

    @pl.when(j == 0)
    def _init():
        acc_ref[...] = x_ref[...].astype(jnp.float32) + b2_ref[...]

    xb = x_ref[...].astype(jnp.bfloat16)
    h1 = jnp.dot(xb, w1_ref[...], preferred_element_type=jnp.float32) + b1_ref[...]
    h1 = jnp.maximum(h1, 0.0)
    acc_ref[...] += jnp.dot(h1.astype(jnp.bfloat16), w2_ref[...],
                            preferred_element_type=jnp.float32)

    @pl.when(j == pl.num_programs(1) - 1)
    def _finalize():
        o_ref[...] = _layernorm_rows(acc_ref[...], g_ref[...], b_ref[...],
                                     eps).astype(o_ref.dtype)


def _ln_kernel(x_ref, g_ref, b_ref, o_ref, *, eps):
    h = x_ref[...].astype(jnp.float32)
    o_ref[...] = _layernorm_rows(h, g_ref[...], b_ref[...], eps).astype(o_ref.dtype)


# ---------------------------------------------------------------------------
# Pallas wrappers
# ---------------------------------------------------------------------------

def attn_block(x, kv_src, p, mask, eps=1e-5):
    """LN(x + OutProj(MHA(Q(x), K(kv_src), V(kv_src), mask))) in one pallas_call."""
    B, T, D = x.shape
    S = kv_src.shape[1]
    H, _, three_dh = p["w_qkv"].shape
    dh = three_dh // 3
    scale = 1.0 / float(dh) ** 0.5
    use_mask = mask is not None

    kern = functools.partial(_attn_block_kernel, dh=dh, scale=scale,
                             eps=eps, use_mask=use_mask)
    in_specs = [
        pl.BlockSpec((None, T, D), lambda b, h: (b, 0, 0)),        # q source / residual
        pl.BlockSpec((None, S, D), lambda b, h: (b, 0, 0)),        # k/v source
        pl.BlockSpec((None, D, 3 * dh), lambda b, h: (h, 0, 0)),   # per-head [wq|wk|wv]
        pl.BlockSpec((None, 1, 3 * dh), lambda b, h: (h, 0, 0)),   # per-head [bq|bk|bv]
        pl.BlockSpec((None, dh, D), lambda b, h: (h, 0, 0)),       # per-head wo rows
        pl.BlockSpec((1, D), lambda b, h: (0, 0)),                 # bo
        pl.BlockSpec((1, D), lambda b, h: (0, 0)),                 # ln gamma
        pl.BlockSpec((1, D), lambda b, h: (0, 0)),                 # ln beta
    ]
    args = [x, kv_src, p["w_qkv"], p["b_qkv"], p["wo"], p["bo"],
            p["ln"]["g"], p["ln"]["b"]]
    if use_mask:
        in_specs.append(pl.BlockSpec((T, S), lambda b, h: (0, 0)))
        args.append(mask.astype(jnp.float32))

    return pl.pallas_call(
        kern,
        out_shape=jax.ShapeDtypeStruct((B, T, D), x.dtype),
        grid_spec=pltpu.PrefetchScalarGridSpec(
            num_scalar_prefetch=0,
            grid=(B, H),
            in_specs=in_specs,
            out_specs=pl.BlockSpec((None, T, D), lambda b, h: (b, 0, 0)),
            scratch_shapes=[pltpu.VMEM((T, D), jnp.float32)],
        ),
        compiler_params=pltpu.CompilerParams(
            dimension_semantics=("parallel", "arbitrary"),
            vmem_limit_bytes=_vmem_limit_bytes()),
    )(*args)


def ffn_add_layernorm(x, w1, b1, w2, b2, gamma, beta, eps=1e-5):
    """LayerNorm(x + FFN(x)); x: (M, D), w1: (D, F) bf16, w2: (F, D) bf16."""
    M, D = x.shape
    F = w1.shape[1]
    tm, Mp = _row_tile(M)
    tf = _ff_tile(F)
    xp = x if Mp == M else jnp.pad(x, ((0, Mp - M), (0, 0)))

    out = pl.pallas_call(
        functools.partial(_ffn_add_ln_kernel, eps=eps),
        out_shape=jax.ShapeDtypeStruct((Mp, D), x.dtype),
        grid_spec=pltpu.PrefetchScalarGridSpec(
            num_scalar_prefetch=0,
            grid=(Mp // tm, F // tf),
            in_specs=[
                pl.BlockSpec((tm, D), lambda i, j: (i, 0)),
                pl.BlockSpec((D, tf), lambda i, j: (0, j)),
                pl.BlockSpec((1, tf), lambda i, j: (0, j)),
                pl.BlockSpec((tf, D), lambda i, j: (j, 0)),
                pl.BlockSpec((1, D), lambda i, j: (0, 0)),
                pl.BlockSpec((1, D), lambda i, j: (0, 0)),
                pl.BlockSpec((1, D), lambda i, j: (0, 0)),
            ],
            out_specs=pl.BlockSpec((tm, D), lambda i, j: (i, 0)),
            scratch_shapes=[pltpu.VMEM((tm, D), jnp.float32)],
        ),
        compiler_params=pltpu.CompilerParams(
            dimension_semantics=("parallel", "arbitrary"),
            vmem_limit_bytes=_vmem_limit_bytes()),
    )(xp, w1, b1, w2, b2, gamma, beta)
    return out if Mp == M else out[:M]


def layernorm(x, gamma, beta, eps=1e-5):
    """LayerNorm over the last axis; x: (M, D)."""
    M, D = x.shape
    tm, Mp = _row_tile(M)
    xp = x if Mp == M else jnp.pad(x, ((0, Mp - M), (0, 0)))
    out = pl.pallas_call(
        functools.partial(_ln_kernel, eps=eps),
        out_shape=jax.ShapeDtypeStruct((Mp, D), x.dtype),
        grid_spec=pltpu.PrefetchScalarGridSpec(
            num_scalar_prefetch=0,
            grid=(Mp // tm,),
            in_specs=[
                pl.BlockSpec((tm, D), lambda i: (i, 0)),
                pl.BlockSpec((1, D), lambda i: (0, 0)),
                pl.BlockSpec((1, D), lambda i: (0, 0)),
            ],
            out_specs=pl.BlockSpec((tm, D), lambda i: (i, 0)),
        ),
        compiler_params=pltpu.CompilerParams(
            dimension_semantics=("parallel",),
            vmem_limit_bytes=_vmem_limit_bytes()),
    )(xp, gamma, beta)
    return out if Mp == M else out[:M]


# ---------------------------------------------------------------------------
# Parameter construction (per-head weight packing baked in; matmul weights bf16)
# ---------------------------------------------------------------------------

def init_decoder_params(key, num_layers, embed_dim, num_heads, ff_dim):
    D, H, F = embed_dim, num_heads, ff_dim
    dh = D // H

    def dense(k, fan_in, fan_out):
        scale = 1.0 / jnp.sqrt(fan_in)
        w = jax.random.uniform(k, (fan_in, fan_out), jnp.float32, -scale, scale)
        b = jnp.zeros((fan_out,), jnp.float32)
        return w, b

    def pack_attn(kq, kk, kv, ko):
        wq, bq = dense(kq, D, D)
        wk, bk = dense(kk, D, D)
        wv, bv = dense(kv, D, D)
        wo, bo = dense(ko, D, D)
        w_qkv = jnp.stack([
            jnp.concatenate([wq[:, h * dh:(h + 1) * dh],
                             wk[:, h * dh:(h + 1) * dh],
                             wv[:, h * dh:(h + 1) * dh]], axis=1)
            for h in range(H)], axis=0)                            # (H, D, 3*dh)
        b_qkv = jnp.stack([
            jnp.concatenate([bq[h * dh:(h + 1) * dh],
                             bk[h * dh:(h + 1) * dh],
                             bv[h * dh:(h + 1) * dh]])[None, :]
            for h in range(H)], axis=0)                            # (H, 1, 3*dh)
        return {
            "w_qkv": w_qkv.astype(jnp.bfloat16),
            "b_qkv": b_qkv,                                        # f32
            "wo": wo.reshape(H, dh, D).astype(jnp.bfloat16),       # per-head rows of Wo
            "bo": bo.reshape(1, D),                                # f32
        }

    def ln():
        return {"g": jnp.ones((1, D), jnp.float32),
                "b": jnp.zeros((1, D), jnp.float32)}

    layers = []
    for _ in range(num_layers):
        keys = jax.random.split(key, 11)
        key = keys[0]
        sa = pack_attn(keys[1], keys[2], keys[3], keys[4])
        ca = pack_attn(keys[5], keys[6], keys[7], keys[8])
        w1, b1 = dense(keys[9], D, F)
        w2, b2 = dense(keys[10], F, D)
        layers.append({
            "self_attn": {**sa, "ln": ln()},
            "cross_attn": {**ca, "ln": ln()},
            "ffn": {"w1": w1.astype(jnp.bfloat16), "b1": b1.reshape(1, F),
                    "w2": w2.astype(jnp.bfloat16), "b2": b2.reshape(1, D),
                    "ln": ln()},
        })
    return {"layers": layers, "final_ln": ln()}


# ---------------------------------------------------------------------------
# Model glue (3 pallas_calls per decoder layer + 1 final LayerNorm)
# ---------------------------------------------------------------------------

def decoder_block(x, encoder_output, tgt_mask, memory_mask, p):
    # masked self-attention (+ out-proj + residual + LN), fully fused
    x = attn_block(x, x, p["self_attn"], tgt_mask)
    # cross-attention (+ out-proj + residual + LN), fully fused
    x = attn_block(x, encoder_output, p["cross_attn"], memory_mask)
    # FFN (+ residual + LN), fully fused with F tiled as a reduction axis
    B, T, D = x.shape
    f = p["ffn"]
    x2d = ffn_add_layernorm(x.reshape(B * T, D), f["w1"], f["b1"],
                            f["w2"], f["b2"], f["ln"]["g"], f["ln"]["b"])
    return x2d.reshape(B, T, D)


def decoder_forward(params, x, encoder_output, tgt_mask, memory_mask=None,
                    num_heads=None):
    del num_heads  # head count is baked into the packed per-head weights
    for layer_p in params["layers"]:
        x = decoder_block(x, encoder_output, tgt_mask, memory_mask, layer_p)
    B, T, D = x.shape
    fl = params["final_ln"]
    x = layernorm(x.reshape(B * T, D), fl["g"], fl["b"]).reshape(B, T, D)
    return x


# ---------------------------------------------------------------------------
# Demo
# ---------------------------------------------------------------------------

if __name__ == "__main__":
    num_layers = 2
    embed_dim = 32
    num_heads = 4
    ff_dim = 64
    B, T, S = 2, 8, 8

    key = jax.random.PRNGKey(0)
    k_par, k_x, k_enc = jax.random.split(key, 3)

    params = init_decoder_params(k_par, num_layers, embed_dim, num_heads, ff_dim)
    x = jax.random.normal(k_x, (B, T, embed_dim), jnp.float32)
    encoder_output = jax.random.normal(k_enc, (B, S, embed_dim), jnp.float32)

    # Causal additive target mask: 0 where attending is allowed, -1e9 otherwise.
    tgt_mask = jnp.where(jnp.tril(jnp.ones((T, T), bool)), 0.0, -1e9).astype(
        jnp.float32)
    memory_mask = None   # compiles the no-mask cross-attention variant

    fwd = jax.jit(decoder_forward)
    out = fwd(params, x, encoder_output, tgt_mask, memory_mask)
    out = jax.block_until_ready(out)
    assert out.shape == (B, T, embed_dim)
    assert bool(jnp.all(jnp.isfinite(out)))
    print("KERNEL_OK")
</pallas_src>

<mosaic_0001>
module attributes {stable_mosaic.version = 11 : i64} {
  func.func @_attn_block_kernel(%arg0: i32, %arg1: i32, %arg2: memref<1x8x32xf32, #tpu.memory_space<vmem>>, %arg3: memref<1x8x32xf32, #tpu.memory_space<vmem>>, %arg4: memref<1x32x24xbf16, #tpu.memory_space<vmem>>, %arg5: memref<1x1x24xf32, #tpu.memory_space<vmem>>, %arg6: memref<1x8x32xbf16, #tpu.memory_space<vmem>>, %arg7: memref<1x32xf32, #tpu.memory_space<vmem>>, %arg8: memref<1x32xf32, #tpu.memory_space<vmem>>, %arg9: memref<1x32xf32, #tpu.memory_space<vmem>>, %arg10: memref<1x8x32xf32, #tpu.memory_space<vmem>>, %arg11: memref<8x32xf32, #tpu.memory_space<vmem>>) attributes {dimension_semantics = [#tpu.dimension_semantics<parallel>, #tpu.dimension_semantics<arbitrary>], iteration_bounds = array<i64: 2, 4>, scalar_prefetch = 0 : i64, scratch_operands = 1 : i64, tpu.core_type = #tpu.core_type<tc>, window_params = [{transform_indices = @transform_0, window_bounds = array<i64: 1, 8, 32>}, {transform_indices = @transform_1, window_bounds = array<i64: 1, 8, 32>}, {transform_indices = @transform_2, window_bounds = array<i64: 1, 32, 24>}, {transform_indices = @transform_3, window_bounds = array<i64: 1, 1, 24>}, {transform_indices = @transform_4, window_bounds = array<i64: 1, 8, 32>}, {pipeline_mode = #tpu.pipeline_mode<synchronous>, transform_indices = @transform_5, window_bounds = array<i64: 1, 32>}, {pipeline_mode = #tpu.pipeline_mode<synchronous>, transform_indices = @transform_6, window_bounds = array<i64: 1, 32>}, {pipeline_mode = #tpu.pipeline_mode<synchronous>, transform_indices = @transform_7, window_bounds = array<i64: 1, 32>}, {transform_indices = @transform_8, window_bounds = array<i64: 1, 8, 32>}]} {
    %c0_i32 = arith.constant 0 : i32
    %0 = arith.cmpi eq, %arg1, %c0_i32 : i32
    %1 = arith.extui %0 : i1 to i32
    %c0_i32_0 = arith.constant 0 : i32
    %2 = arith.cmpi ne, %1, %c0_i32_0 : i32
    scf.if %2 {
      %c0_28 = arith.constant 0 : index
      %c0_29 = arith.constant 0 : index
      %c0_30 = arith.constant 0 : index
      %56 = vector.load %arg2[%c0_28, %c0_29, %c0_30] : memref<1x8x32xf32, #tpu.memory_space<vmem>>, vector<1x8x32xf32>
      %57 = vector.shape_cast %56 : vector<1x8x32xf32> to vector<8x32xf32>
      %c0_31 = arith.constant 0 : index
      %c0_32 = arith.constant 0 : index
      %58 = vector.load %arg7[%c0_31, %c0_32] : memref<1x32xf32, #tpu.memory_space<vmem>>, vector<1x32xf32>
      %59 = vector.broadcast %58 : vector<1x32xf32> to vector<8x32xf32>
      %60 = arith.addf %57, %59 : vector<8x32xf32>
      %c0_33 = arith.constant 0 : index
      %c0_34 = arith.constant 0 : index
      %61 = vector.load %arg11[%c0_33, %c0_34] : memref<8x32xf32, #tpu.memory_space<vmem>>, vector<8x32xf32>
      tpu.vector_store %arg11[%c0_33, %c0_34], %60 {strides = array<i32>} : memref<8x32xf32, #tpu.memory_space<vmem>>, vector<8x32xf32>,
    } else {
    }
    %c0 = arith.constant 0 : index
    %c0_1 = arith.constant 0 : index
    %c0_2 = arith.constant 0 : index
    %3 = vector.load %arg2[%c0, %c0_1, %c0_2] : memref<1x8x32xf32, #tpu.memory_space<vmem>>, vector<1x8x32xf32>
    %4 = vector.shape_cast %3 : vector<1x8x32xf32> to vector<8x32xf32>
    %5 = arith.truncf %4 : vector<8x32xf32> to vector<8x32xbf16>
    %c0_3 = arith.constant 0 : index
    %c0_4 = arith.constant 0 : index
    %c0_5 = arith.constant 0 : index
    %6 = vector.load %arg3[%c0_3, %c0_4, %c0_5] : memref<1x8x32xf32, #tpu.memory_space<vmem>>, vector<1x8x32xf32>
    %7 = vector.shape_cast %6 : vector<1x8x32xf32> to vector<8x32xf32>
    %8 = arith.truncf %7 : vector<8x32xf32> to vector<8x32xbf16>
    %c0_6 = arith.constant 0 : index
    %c0_7 = arith.constant 0 : index
    %c0_8 = arith.constant 0 : index
    %9 = vector.load %arg4[%c0_6, %c0_7, %c0_8] : memref<1x32x24xbf16, #tpu.memory_space<vmem>>, vector<1x32x24xbf16>
    %10 = vector.shape_cast %9 : vector<1x32x24xbf16> to vector<32x24xbf16>
    %c0_9 = arith.constant 0 : index
    %c0_10 = arith.constant 0 : index
    %c0_11 = arith.constant 0 : index
    %11 = vector.load %arg5[%c0_9, %c0_10, %c0_11] : memref<1x1x24xf32, #tpu.memory_space<vmem>>, vector<1x1x24xf32>
    %12 = vector.shape_cast %11 : vector<1x1x24xf32> to vector<1x24xf32>
    %13 = vector.extract_strided_slice %10 {offsets = [0, 0], sizes = [32, 8], strides = [1, 1]} : vector<32x24xbf16> to vector<32x8xbf16>
    %cst = arith.constant dense<0.000000e+00> : vector<8x8xf32>
    %14 = tpu.matmul %5, %13, %cst {dimension_numbers = #tpu.dot_dimension_numbers<[1], [0], [0], [1], [0, 0, 1, 1], [], []>} : vector<8x32xbf16>, vector<32x8xbf16>, vector<8x8xf32> -> vector<8x8xf32>
    %15 = vector.extract_strided_slice %12 {offsets = [0, 0], sizes = [1, 8], strides = [1, 1]} : vector<1x24xf32> to vector<1x8xf32>
    %16 = vector.broadcast %15 : vector<1x8xf32> to vector<8x8xf32>
    %17 = arith.addf %14, %16 : vector<8x8xf32>
    %cst_12 = arith.constant 0.353553385 : f32
    %18 = vector.broadcast %cst_12 : f32 to vector<8x8xf32>
    %19 = arith.mulf %17, %18 : vector<8x8xf32>
    %20 = vector.extract_strided_slice %10 {offsets = [0, 8], sizes = [32, 8], strides = [1, 1]} : vector<32x24xbf16> to vector<32x8xbf16>
    %cst_13 = arith.constant dense<0.000000e+00> : vector<8x8xf32>
    %21 = tpu.matmul %8, %20, %cst_13 {dimension_numbers = #tpu.dot_dimension_numbers<[1], [0], [0], [1], [0, 0, 1, 1], [], []>} : vector<8x32xbf16>, vector<32x8xbf16>, vector<8x8xf32> -> vector<8x8xf32>
    %22 = vector.extract_strided_slice %12 {offsets = [0, 8], sizes = [1, 8], strides = [1, 1]} : vector<1x24xf32> to vector<1x8xf32>
    %23 = vector.broadcast %22 : vector<1x8xf32> to vector<8x8xf32>
    %24 = arith.addf %21, %23 : vector<8x8xf32>
    %25 = vector.extract_strided_slice %10 {offsets = [0, 16], sizes = [32, 8], strides = [1, 1]} : vector<32x24xbf16> to vector<32x8xbf16>
    %cst_14 = arith.constant dense<0.000000e+00> : vector<8x8xf32>
    %26 = tpu.matmul %8, %25, %cst_14 {dimension_numbers = #tpu.dot_dimension_numbers<[1], [0], [0], [1], [0, 0, 1, 1], [], []>} : vector<8x32xbf16>, vector<32x8xbf16>, vector<8x8xf32> -> vector<8x8xf32>
    %27 = vector.extract_strided_slice %12 {offsets = [0, 16], sizes = [1, 8], strides = [1, 1]} : vector<1x24xf32> to vector<1x8xf32>
    %28 = vector.broadcast %27 : vector<1x8xf32> to vector<8x8xf32>
    %29 = arith.addf %26, %28 : vector<8x8xf32>
    %30 = arith.truncf %19 : vector<8x8xf32> to vector<8x8xbf16>
    %31 = arith.truncf %24 : vector<8x8xf32> to vector<8x8xbf16>
    %cst_15 = arith.constant dense<0.000000e+00> : vector<8x8xf32>
    %32 = tpu.matmul %30, %31, %cst_15 {dimension_numbers = #tpu.dot_dimension_numbers<[1], [1], [0], [0], [0, 0, 1, 0], [], []>} : vector<8x8xbf16>, vector<8x8xbf16>, vector<8x8xf32> -> vector<8x8xf32>
    %cst_16 = arith.constant dense<0xFF800000> : vector<8xf32>
    %33 = vector.multi_reduction <maximumf>, %32, %cst_16 [1] : vector<8x8xf32> to vector<8xf32>
    %34 = vector.shape_cast %33 : vector<8xf32> to vector<8x1xf32>
    %35 = vector.broadcast %34 : vector<8x1xf32> to vector<8x8xf32>
    %36 = arith.subf %32, %35 : vector<8x8xf32>
    %37 = math.exp %36 : vector<8x8xf32>
    %cst_17 = arith.constant dense<0.000000e+00> : vector<8xf32>
    %38 = vector.multi_reduction <add>, %37, %cst_17 [1] : vector<8x8xf32> to vector<8xf32>
    %39 = vector.shape_cast %38 : vector<8xf32> to vector<8x1xf32>
    %40 = tpu.reciprocal %39 {approx = true} : vector<8x1xf32> -> vector<8x1xf32>
    %41 = vector.broadcast %40 : vector<8x1xf32> to vector<8x8xf32>
    %42 = arith.mulf %37, %41 : vector<8x8xf32>
    %43 = arith.truncf %42 : vector<8x8xf32> to vector<8x8xbf16>
    %44 = arith.truncf %29 : vector<8x8xf32> to vector<8x8xbf16>
    %cst_18 = arith.constant dense<0.000000e+00> : vector<8x8xf32>
    %45 = tpu.matmul %43, %44, %cst_18 {dimension_numbers = #tpu.dot_dimension_numbers<[1], [0], [0], [1], [0, 0, 1, 1], [], []>} : vector<8x8xbf16>, vector<8x8xbf16>, vector<8x8xf32> -> vector<8x8xf32>
    %c0_19 = arith.constant 0 : index
    %c0_20 = arith.constant 0 : index
    %46 = vector.load %arg11[%c0_19, %c0_20] : memref<8x32xf32, #tpu.memory_space<vmem>>, vector<8x32xf32>
    %47 = arith.truncf %45 : vector<8x8xf32> to vector<8x8xbf16>
    %c0_21 = arith.constant 0 : index
    %c0_22 = arith.constant 0 : index
    %c0_23 = arith.constant 0 : index
    %48 = vector.load %arg6[%c0_21, %c0_22, %c0_23] : memref<1x8x32xbf16, #tpu.memory_space<vmem>>, vector<1x8x32xbf16>
    %49 = vector.shape_cast %48 : vector<1x8x32xbf16> to vector<8x32xbf16>
    %cst_24 = arith.constant dense<0.000000e+00> : vector<8x32xf32>
    %50 = tpu.matmul %47, %49, %cst_24 {dimension_numbers = #tpu.dot_dimension_numbers<[1], [0], [0], [1], [0, 0, 1, 1], [], []>} : vector<8x8xbf16>, vector<8x32xbf16>, vector<8x32xf32> -> vector<8x32xf32>
    %51 = arith.addf %46, %50 : vector<8x32xf32>
    %c0_25 = arith.constant 0 : index
    %c0_26 = arith.constant 0 : index
    %52 = vector.load %arg11[%c0_25, %c0_26] : memref<8x32xf32, #tpu.memory_space<vmem>>, vector<8x32xf32>
    tpu.vector_store %arg11[%c0_25, %c0_26], %51 {strides = array<i32>} : memref<8x32xf32, #tpu.memory_space<vmem>>, vector<8x32xf32>,
    %c3_i32 = arith.constant 3 : i32
    %53 = arith.cmpi eq, %arg1, %c3_i32 : i32
    %54 = arith.extui %53 : i1 to i32
    %c0_i32_27 = arith.constant 0 : i32
    %55 = arith.cmpi ne, %54, %c0_i32_27 : i32
    scf.if %55 {
      %c0_28 = arith.constant 0 : index
      %c0_29 = arith.constant 0 : index
      %56 = vector.load %arg11[%c0_28, %c0_29] : memref<8x32xf32, #tpu.memory_space<vmem>>, vector<8x32xf32>
      %c0_30 = arith.constant 0 : index
      %c0_31 = arith.constant 0 : index
      %57 = vector.load %arg8[%c0_30, %c0_31] : memref<1x32xf32, #tpu.memory_space<vmem>>, vector<1x32xf32>
      %c0_32 = arith.constant 0 : index
      %c0_33 = arith.constant 0 : index
      %58 = vector.load %arg9[%c0_32, %c0_33] : memref<1x32xf32, #tpu.memory_space<vmem>>, vector<1x32xf32>
      %cst_34 = arith.constant dense<0.000000e+00> : vector<8xf32>
      %59 = vector.multi_reduction <add>, %56, %cst_34 [1] : vector<8x32xf32> to vector<8xf32>
      %60 = vector.shape_cast %59 : vector<8xf32> to vector<8x1xf32>
      %cst_35 = arith.constant 3.200000e+01 : f32
      %61 = vector.broadcast %cst_35 : f32 to vector<8x1xf32>
      %62 = arith.divf %60, %61 : vector<8x1xf32>
      %63 = vector.broadcast %62 : vector<8x1xf32> to vector<8x32xf32>
      %64 = arith.subf %56, %63 : vector<8x32xf32>
      %65 = vector.broadcast %62 : vector<8x1xf32> to vector<8x32xf32>
      %66 = arith.subf %56, %65 : vector<8x32xf32>
      %67 = arith.mulf %64, %66 : vector<8x32xf32>
      %cst_36 = arith.constant dense<0.000000e+00> : vector<8xf32>
      %68 = vector.multi_reduction <add>, %67, %cst_36 [1] : vector<8x32xf32> to vector<8xf32>
      %69 = vector.shape_cast %68 : vector<8xf32> to vector<8x1xf32>
      %cst_37 = arith.constant 3.200000e+01 : f32
      %70 = vector.broadcast %cst_37 : f32 to vector<8x1xf32>
      %71 = arith.divf %69, %70 : vector<8x1xf32>
      %72 = vector.broadcast %62 : vector<8x1xf32> to vector<8x32xf32>
      %73 = arith.subf %56, %72 : vector<8x32xf32>
      %cst_38 = arith.constant 9.99999974E-6 : f32
      %74 = vector.broadcast %cst_38 : f32 to vector<8x1xf32>
      %75 = arith.addf %71, %74 : vector<8x1xf32>
      %76 = math.rsqrt %75 : vector<8x1xf32>
      %77 = vector.broadcast %76 : vector<8x1xf32> to vector<8x32xf32>
      %78 = arith.mulf %73, %77 : vector<8x32xf32>
      %79 = vector.broadcast %57 : vector<1x32xf32> to vector<8x32xf32>
      %80 = arith.mulf %78, %79 : vector<8x32xf32>
      %81 = vector.broadcast %58 : vector<1x32xf32> to vector<8x32xf32>
      %82 = arith.addf %80, %81 : vector<8x32xf32>
      %c0_39 = arith.constant 0 : index
      %c0_40 = arith.constant 0 : index
      %c0_41 = arith.constant 0 : index
      %83 = vector.load %arg10[%c0_39, %c0_40, %c0_41] : memref<1x8x32xf32, #tpu.memory_space<vmem>>, vector<1x8x32xf32>
      %84 = vector.shape_cast %83 : vector<1x8x32xf32> to vector<8x32xf32>
      %85 = vector.shape_cast %82 : vector<8x32xf32> to vector<1x8x32xf32>
      tpu.vector_store %arg10[%c0_39, %c0_40, %c0_41], %85 {strides = array<i32>} : memref<1x8x32xf32, #tpu.memory_space<vmem>>, vector<1x8x32xf32>,
    } else {
    }
    return
  }
  func.func @transform_0(%arg0: i32, %arg1: i32) -> (i32, i32, i32) {
    %c0_i32 = arith.constant 0 : i32
    %c0_i32_0 = arith.constant 0 : i32
    %c0_i32_1 = arith.constant 0 : i32
    return %arg0, %c0_i32, %c0_i32_0 : i32, i32, i32
  }
  func.func @transform_1(%arg0: i32, %arg1: i32) -> (i32, i32, i32) {
    %c0_i32 = arith.constant 0 : i32
    %c0_i32_0 = arith.constant 0 : i32
    %c0_i32_1 = arith.constant 0 : i32
    return %arg0, %c0_i32, %c0_i32_0 : i32, i32, i32
  }
  func.func @transform_2(%arg0: i32, %arg1: i32) -> (i32, i32, i32) {
    %c0_i32 = arith.constant 0 : i32
    %c0_i32_0 = arith.constant 0 : i32
    %c0_i32_1 = arith.constant 0 : i32
    return %arg1, %c0_i32, %c0_i32_0 : i32, i32, i32
  }
  func.func @transform_3(%arg0: i32, %arg1: i32) -> (i32, i32, i32) {
    %c0_i32 = arith.constant 0 : i32
    %c0_i32_0 = arith.constant 0 : i32
    %c0_i32_1 = arith.constant 0 : i32
    return %arg1, %c0_i32, %c0_i32_0 : i32, i32, i32
  }
  func.func @transform_4(%arg0: i32, %arg1: i32) -> (i32, i32, i32) {
    %c0_i32 = arith.constant 0 : i32
    %c0_i32_0 = arith.constant 0 : i32
    %c0_i32_1 = arith.constant 0 : i32
    return %arg1, %c0_i32, %c0_i32_0 : i32, i32, i32
  }
  func.func @transform_5(%arg0: i32, %arg1: i32) -> (i32, i32) {
    %c0_i32 = arith.constant 0 : i32
    %c0_i32_0 = arith.constant 0 : i32
    %c0_i32_1 = arith.constant 0 : i32
    return %c0_i32, %c0_i32_0 : i32, i32
  }
  func.func @transform_6(%arg0: i32, %arg1: i32) -> (i32, i32) {
    %c0_i32 = arith.constant 0 : i32
    %c0_i32_0 = arith.constant 0 : i32
    %c0_i32_1 = arith.constant 0 : i32
    return %c0_i32, %c0_i32_0 : i32, i32
  }
  func.func @transform_7(%arg0: i32, %arg1: i32) -> (i32, i32) {
    %c0_i32 = arith.constant 0 : i32
    %c0_i32_0 = arith.constant 0 : i32
    %c0_i32_1 = arith.constant 0 : i32
    return %c0_i32, %c0_i32_0 : i32, i32
  }
  func.func @transform_8(%arg0: i32, %arg1: i32) -> (i32, i32, i32) {
    %c0_i32 = arith.constant 0 : i32
    %c0_i32_0 = arith.constant 0 : i32
    %c0_i32_1 = arith.constant 0 : i32
    return %arg0, %c0_i32, %c0_i32_0 : i32, i32, i32
  }
}

module attributes {stable_mosaic.version = 11 : i64} {
  func.func @_attn_block_kernel(%arg0: i32, %arg1: i32, %arg2: memref<1x8x32xf32, #tpu.memory_space<vmem>>, %arg3: memref<1x8x32xf32, #tpu.memory_space<vmem>>, %arg4: memref<1x32x24xbf16, #tpu.memory_space<vmem>>, %arg5: memref<1x1x24xf32, #tpu.memory_space<vmem>>, %arg6: memref<1x8x32xbf16, #tpu.memory_space<vmem>>, %arg7: memref<1x32xf32, #tpu.memory_space<vmem>>, %arg8: memref<1x32xf32, #tpu.memory_space<vmem>>, %arg9: memref<1x32xf32, #tpu.memory_space<vmem>>, %arg10: memref<8x8xf32, #tpu.memory_space<vmem>>, %arg11: memref<1x8x32xf32, #tpu.memory_space<vmem>>, %arg12: memref<8x32xf32, #tpu.memory_space<vmem>>) attributes {dimension_semantics = [#tpu.dimension_semantics<parallel>, #tpu.dimension_semantics<arbitrary>], iteration_bounds = array<i64: 2, 4>, scalar_prefetch = 0 : i64, scratch_operands = 1 : i64, tpu.core_type = #tpu.core_type<tc>, window_params = [{transform_indices = @transform_0, window_bounds = array<i64: 1, 8, 32>}, {transform_indices = @transform_1, window_bounds = array<i64: 1, 8, 32>}, {transform_indices = @transform_2, window_bounds = array<i64: 1, 32, 24>}, {transform_indices = @transform_3, window_bounds = array<i64: 1, 1, 24>}, {transform_indices = @transform_4, window_bounds = array<i64: 1, 8, 32>}, {pipeline_mode = #tpu.pipeline_mode<synchronous>, transform_indices = @transform_5, window_bounds = array<i64: 1, 32>}, {pipeline_mode = #tpu.pipeline_mode<synchronous>, transform_indices = @transform_6, window_bounds = array<i64: 1, 32>}, {pipeline_mode = #tpu.pipeline_mode<synchronous>, transform_indices = @transform_7, window_bounds = array<i64: 1, 32>}, {pipeline_mode = #tpu.pipeline_mode<synchronous>, transform_indices = @transform_8, window_bounds = array<i64: 8, 8>}, {transform_indices = @transform_9, window_bounds = array<i64: 1, 8, 32>}]} {
    %c0_i32 = arith.constant 0 : i32
    %0 = arith.cmpi eq, %arg1, %c0_i32 : i32
    %1 = arith.extui %0 : i1 to i32
    %c0_i32_0 = arith.constant 0 : i32
    %2 = arith.cmpi ne, %1, %c0_i32_0 : i32
    scf.if %2 {
      %c0_30 = arith.constant 0 : index
      %c0_31 = arith.constant 0 : index
      %c0_32 = arith.constant 0 : index
      %58 = vector.load %arg2[%c0_30, %c0_31, %c0_32] : memref<1x8x32xf32, #tpu.memory_space<vmem>>, vector<1x8x32xf32>
      %59 = vector.shape_cast %58 : vector<1x8x32xf32> to vector<8x32xf32>
      %c0_33 = arith.constant 0 : index
      %c0_34 = arith.constant 0 : index
      %60 = vector.load %arg7[%c0_33, %c0_34] : memref<1x32xf32, #tpu.memory_space<vmem>>, vector<1x32xf32>
      %61 = vector.broadcast %60 : vector<1x32xf32> to vector<8x32xf32>
      %62 = arith.addf %59, %61 : vector<8x32xf32>
      %c0_35 = arith.constant 0 : index
      %c0_36 = arith.constant 0 : index
      %63 = vector.load %arg12[%c0_35, %c0_36] : memref<8x32xf32, #tpu.memory_space<vmem>>, vector<8x32xf32>
      tpu.vector_store %arg12[%c0_35, %c0_36], %62 {strides = array<i32>} : memref<8x32xf32, #tpu.memory_space<vmem>>, vector<8x32xf32>,
    } else {
    }
    %c0 = arith.constant 0 : index
    %c0_1 = arith.constant 0 : index
    %c0_2 = arith.constant 0 : index
    %3 = vector.load %arg2[%c0, %c0_1, %c0_2] : memref<1x8x32xf32, #tpu.memory_space<vmem>>, vector<1x8x32xf32>
    %4 = vector.shape_cast %3 : vector<1x8x32xf32> to vector<8x32xf32>
    %5 = arith.truncf %4 : vector<8x32xf32> to vector<8x32xbf16>
    %c0_3 = arith.constant 0 : index
    %c0_4 = arith.constant 0 : index
    %c0_5 = arith.constant 0 : index
    %6 = vector.load %arg3[%c0_3, %c0_4, %c0_5] : memref<1x8x32xf32, #tpu.memory_space<vmem>>, vector<1x8x32xf32>
    %7 = vector.shape_cast %6 : vector<1x8x32xf32> to vector<8x32xf32>
    %8 = arith.truncf %7 : vector<8x32xf32> to vector<8x32xbf16>
    %c0_6 = arith.constant 0 : index
    %c0_7 = arith.constant 0 : index
    %c0_8 = arith.constant 0 : index
    %9 = vector.load %arg4[%c0_6, %c0_7, %c0_8] : memref<1x32x24xbf16, #tpu.memory_space<vmem>>, vector<1x32x24xbf16>
    %10 = vector.shape_cast %9 : vector<1x32x24xbf16> to vector<32x24xbf16>
    %c0_9 = arith.constant 0 : index
    %c0_10 = arith.constant 0 : index
    %c0_11 = arith.constant 0 : index
    %11 = vector.load %arg5[%c0_9, %c0_10, %c0_11] : memref<1x1x24xf32, #tpu.memory_space<vmem>>, vector<1x1x24xf32>
    %12 = vector.shape_cast %11 : vector<1x1x24xf32> to vector<1x24xf32>
    %13 = vector.extract_strided_slice %10 {offsets = [0, 0], sizes = [32, 8], strides = [1, 1]} : vector<32x24xbf16> to vector<32x8xbf16>
    %cst = arith.constant dense<0.000000e+00> : vector<8x8xf32>
    %14 = tpu.matmul %5, %13, %cst {dimension_numbers = #tpu.dot_dimension_numbers<[1], [0], [0], [1], [0, 0, 1, 1], [], []>} : vector<8x32xbf16>, vector<32x8xbf16>, vector<8x8xf32> -> vector<8x8xf32>
    %15 = vector.extract_strided_slice %12 {offsets = [0, 0], sizes = [1, 8], strides = [1, 1]} : vector<1x24xf32> to vector<1x8xf32>
    %16 = vector.broadcast %15 : vector<1x8xf32> to vector<8x8xf32>
    %17 = arith.addf %14, %16 : vector<8x8xf32>
    %cst_12 = arith.constant 0.353553385 : f32
    %18 = vector.broadcast %cst_12 : f32 to vector<8x8xf32>
    %19 = arith.mulf %17, %18 : vector<8x8xf32>
    %20 = vector.extract_strided_slice %10 {offsets = [0, 8], sizes = [32, 8], strides = [1, 1]} : vector<32x24xbf16> to vector<32x8xbf16>
    %cst_13 = arith.constant dense<0.000000e+00> : vector<8x8xf32>
    %21 = tpu.matmul %8, %20, %cst_13 {dimension_numbers = #tpu.dot_dimension_numbers<[1], [0], [0], [1], [0, 0, 1, 1], [], []>} : vector<8x32xbf16>, vector<32x8xbf16>, vector<8x8xf32> -> vector<8x8xf32>
    %22 = vector.extract_strided_slice %12 {offsets = [0, 8], sizes = [1, 8], strides = [1, 1]} : vector<1x24xf32> to vector<1x8xf32>
    %23 = vector.broadcast %22 : vector<1x8xf32> to vector<8x8xf32>
    %24 = arith.addf %21, %23 : vector<8x8xf32>
    %25 = vector.extract_strided_slice %10 {offsets = [0, 16], sizes = [32, 8], strides = [1, 1]} : vector<32x24xbf16> to vector<32x8xbf16>
    %cst_14 = arith.constant dense<0.000000e+00> : vector<8x8xf32>
    %26 = tpu.matmul %8, %25, %cst_14 {dimension_numbers = #tpu.dot_dimension_numbers<[1], [0], [0], [1], [0, 0, 1, 1], [], []>} : vector<8x32xbf16>, vector<32x8xbf16>, vector<8x8xf32> -> vector<8x8xf32>
    %27 = vector.extract_strided_slice %12 {offsets = [0, 16], sizes = [1, 8], strides = [1, 1]} : vector<1x24xf32> to vector<1x8xf32>
    %28 = vector.broadcast %27 : vector<1x8xf32> to vector<8x8xf32>
    %29 = arith.addf %26, %28 : vector<8x8xf32>
    %30 = arith.truncf %19 : vector<8x8xf32> to vector<8x8xbf16>
    %31 = arith.truncf %24 : vector<8x8xf32> to vector<8x8xbf16>
    %cst_15 = arith.constant dense<0.000000e+00> : vector<8x8xf32>
    %32 = tpu.matmul %30, %31, %cst_15 {dimension_numbers = #tpu.dot_dimension_numbers<[1], [1], [0], [0], [0, 0, 1, 0], [], []>} : vector<8x8xbf16>, vector<8x8xbf16>, vector<8x8xf32> -> vector<8x8xf32>
    %c0_16 = arith.constant 0 : index
    %c0_17 = arith.constant 0 : index
    %33 = vector.load %arg10[%c0_16, %c0_17] : memref<8x8xf32, #tpu.memory_space<vmem>>, vector<8x8xf32>
    %34 = arith.addf %32, %33 : vector<8x8xf32>
    %cst_18 = arith.constant dense<0xFF800000> : vector<8xf32>
    %35 = vector.multi_reduction <maximumf>, %34, %cst_18 [1] : vector<8x8xf32> to vector<8xf32>
    %36 = vector.shape_cast %35 : vector<8xf32> to vector<8x1xf32>
    %37 = vector.broadcast %36 : vector<8x1xf32> to vector<8x8xf32>
    %38 = arith.subf %34, %37 : vector<8x8xf32>
    %39 = math.exp %38 : vector<8x8xf32>
    %cst_19 = arith.constant dense<0.000000e+00> : vector<8xf32>
    %40 = vector.multi_reduction <add>, %39, %cst_19 [1] : vector<8x8xf32> to vector<8xf32>
    %41 = vector.shape_cast %40 : vector<8xf32> to vector<8x1xf32>
    %42 = tpu.reciprocal %41 {approx = true} : vector<8x1xf32> -> vector<8x1xf32>
    %43 = vector.broadcast %42 : vector<8x1xf32> to vector<8x8xf32>
    %44 = arith.mulf %39, %43 : vector<8x8xf32>
    %45 = arith.truncf %44 : vector<8x8xf32> to vector<8x8xbf16>
    %46 = arith.truncf %29 : vector<8x8xf32> to vector<8x8xbf16>
    %cst_20 = arith.constant dense<0.000000e+00> : vector<8x8xf32>
    %47 = tpu.matmul %45, %46, %cst_20 {dimension_numbers = #tpu.dot_dimension_numbers<[1], [0], [0], [1], [0, 0, 1, 1], [], []>} : vector<8x8xbf16>, vector<8x8xbf16>, vector<8x8xf32> -> vector<8x8xf32>
    %c0_21 = arith.constant 0 : index
    %c0_22 = arith.constant 0 : index
    %48 = vector.load %arg12[%c0_21, %c0_22] : memref<8x32xf32, #tpu.memory_space<vmem>>, vector<8x32xf32>
    %49 = arith.truncf %47 : vector<8x8xf32> to vector<8x8xbf16>
    %c0_23 = arith.constant 0 : index
    %c0_24 = arith.constant 0 : index
    %c0_25 = arith.constant 0 : index
    %50 = vector.load %arg6[%c0_23, %c0_24, %c0_25] : memref<1x8x32xbf16, #tpu.memory_space<vmem>>, vector<1x8x32xbf16>
    %51 = vector.shape_cast %50 : vector<1x8x32xbf16> to vector<8x32xbf16>
    %cst_26 = arith.constant dense<0.000000e+00> : vector<8x32xf32>
    %52 = tpu.matmul %49, %51, %cst_26 {dimension_numbers = #tpu.dot_dimension_numbers<[1], [0], [0], [1], [0, 0, 1, 1], [], []>} : vector<8x8xbf16>, vector<8x32xbf16>, vector<8x32xf32> -> vector<8x32xf32>
    %53 = arith.addf %48, %52 : vector<8x32xf32>
    %c0_27 = arith.constant 0 : index
    %c0_28 = arith.constant 0 : index
    %54 = vector.load %arg12[%c0_27, %c0_28] : memref<8x32xf32, #tpu.memory_space<vmem>>, vector<8x32xf32>
    tpu.vector_store %arg12[%c0_27, %c0_28], %53 {strides = array<i32>} : memref<8x32xf32, #tpu.memory_space<vmem>>, vector<8x32xf32>,
    %c3_i32 = arith.constant 3 : i32
    %55 = arith.cmpi eq, %arg1, %c3_i32 : i32
    %56 = arith.extui %55 : i1 to i32
    %c0_i32_29 = arith.constant 0 : i32
    %57 = arith.cmpi ne, %56, %c0_i32_29 : i32
    scf.if %57 {
      %c0_30 = arith.constant 0 : index
      %c0_31 = arith.constant 0 : index
      %58 = vector.load %arg12[%c0_30, %c0_31] : memref<8x32xf32, #tpu.memory_space<vmem>>, vector<8x32xf32>
      %c0_32 = arith.constant 0 : index
      %c0_33 = arith.constant 0 : index
      %59 = vector.load %arg8[%c0_32, %c0_33] : memref<1x32xf32, #tpu.memory_space<vmem>>, vector<1x32xf32>
      %c0_34 = arith.constant 0 : index
      %c0_35 = arith.constant 0 : index
      %60 = vector.load %arg9[%c0_34, %c0_35] : memref<1x32xf32, #tpu.memory_space<vmem>>, vector<1x32xf32>
      %cst_36 = arith.constant dense<0.000000e+00> : vector<8xf32>
      %61 = vector.multi_reduction <add>, %58, %cst_36 [1] : vector<8x32xf32> to vector<8xf32>
      %62 = vector.shape_cast %61 : vector<8xf32> to vector<8x1xf32>
      %cst_37 = arith.constant 3.200000e+01 : f32
      %63 = vector.broadcast %cst_37 : f32 to vector<8x1xf32>
      %64 = arith.divf %62, %63 : vector<8x1xf32>
      %65 = vector.broadcast %64 : vector<8x1xf32> to vector<8x32xf32>
      %66 = arith.subf %58, %65 : vector<8x32xf32>
      %67 = vector.broadcast %64 : vector<8x1xf32> to vector<8x32xf32>
      %68 = arith.subf %58, %67 : vector<8x32xf32>
      %69 = arith.mulf %66, %68 : vector<8x32xf32>
      %cst_38 = arith.constant dense<0.000000e+00> : vector<8xf32>
      %70 = vector.multi_reduction <add>, %69, %cst_38 [1] : vector<8x32xf32> to vector<8xf32>
      %71 = vector.shape_cast %70 : vector<8xf32> to vector<8x1xf32>
      %cst_39 = arith.constant 3.200000e+01 : f32
      %72 = vector.broadcast %cst_39 : f32 to vector<8x1xf32>
      %73 = arith.divf %71, %72 : vector<8x1xf32>
      %74 = vector.broadcast %64 : vector<8x1xf32> to vector<8x32xf32>
      %75 = arith.subf %58, %74 : vector<8x32xf32>
      %cst_40 = arith.constant 9.99999974E-6 : f32
      %76 = vector.broadcast %cst_40 : f32 to vector<8x1xf32>
      %77 = arith.addf %73, %76 : vector<8x1xf32>
      %78 = math.rsqrt %77 : vector<8x1xf32>
      %79 = vector.broadcast %78 : vector<8x1xf32> to vector<8x32xf32>
      %80 = arith.mulf %75, %79 : vector<8x32xf32>
      %81 = vector.broadcast %59 : vector<1x32xf32> to vector<8x32xf32>
      %82 = arith.mulf %80, %81 : vector<8x32xf32>
      %83 = vector.broadcast %60 : vector<1x32xf32> to vector<8x32xf32>
      %84 = arith.addf %82, %83 : vector<8x32xf32>
      %c0_41 = arith.constant 0 : index
      %c0_42 = arith.constant 0 : index
      %c0_43 = arith.constant 0 : index
      %85 = vector.load %arg11[%c0_41, %c0_42, %c0_43] : memref<1x8x32xf32, #tpu.memory_space<vmem>>, vector<1x8x32xf32>
      %86 = vector.shape_cast %85 : vector<1x8x32xf32> to vector<8x32xf32>
      %87 = vector.shape_cast %84 : vector<8x32xf32> to vector<1x8x32xf32>
      tpu.vector_store %arg11[%c0_41, %c0_42, %c0_43], %87 {strides = array<i32>} : memref<1x8x32xf32, #tpu.memory_space<vmem>>, vector<1x8x32xf32>,
    } else {
    }
    return
  }
  func.func @transform_0(%arg0: i32, %arg1: i32) -> (i32, i32, i32) {
    %c0_i32 = arith.constant 0 : i32
    %c0_i32_0 = arith.constant 0 : i32
    %c0_i32_1 = arith.constant 0 : i32
    return %arg0, %c0_i32, %c0_i32_0 : i32, i32, i32
  }
  func.func @transform_1(%arg0: i32, %arg1: i32) -> (i32, i32, i32) {
    %c0_i32 = arith.constant 0 : i32
    %c0_i32_0 = arith.constant 0 : i32
    %c0_i32_1 = arith.constant 0 : i32
    return %arg0, %c0_i32, %c0_i32_0 : i32, i32, i32
  }
  func.func @transform_2(%arg0: i32, %arg1: i32) -> (i32, i32, i32) {
    %c0_i32 = arith.constant 0 : i32
    %c0_i32_0 = arith.constant 0 : i32
    %c0_i32_1 = arith.constant 0 : i32
    return %arg1, %c0_i32, %c0_i32_0 : i32, i32, i32
  }
  func.func @transform_3(%arg0: i32, %arg1: i32) -> (i32, i32, i32) {
    %c0_i32 = arith.constant 0 : i32
    %c0_i32_0 = arith.constant 0 : i32
    %c0_i32_1 = arith.constant 0 : i32
    return %arg1, %c0_i32, %c0_i32_0 : i32, i32, i32
  }
  func.func @transform_4(%arg0: i32, %arg1: i32) -> (i32, i32, i32) {
    %c0_i32 = arith.constant 0 : i32
    %c0_i32_0 = arith.constant 0 : i32
    %c0_i32_1 = arith.constant 0 : i32
    return %arg1, %c0_i32, %c0_i32_0 : i32, i32, i32
  }
  func.func @transform_5(%arg0: i32, %arg1: i32) -> (i32, i32) {
    %c0_i32 = arith.constant 0 : i32
    %c0_i32_0 = arith.constant 0 : i32
    %c0_i32_1 = arith.constant 0 : i32
    return %c0_i32, %c0_i32_0 : i32, i32
  }
  func.func @transform_6(%arg0: i32, %arg1: i32) -> (i32, i32) {
    %c0_i32 = arith.constant 0 : i32
    %c0_i32_0 = arith.constant 0 : i32
    %c0_i32_1 = arith.constant 0 : i32
    return %c0_i32, %c0_i32_0 : i32, i32
  }
  func.func @transform_7(%arg0: i32, %arg1: i32) -> (i32, i32) {
    %c0_i32 = arith.constant 0 : i32
    %c0_i32_0 = arith.constant 0 : i32
    %c0_i32_1 = arith.constant 0 : i32
    return %c0_i32, %c0_i32_0 : i32, i32
  }
  func.func @transform_8(%arg0: i32, %arg1: i32) -> (i32, i32) {
    %c0_i32 = arith.constant 0 : i32
    %c0_i32_0 = arith.constant 0 : i32
    %c0_i32_1 = arith.constant 0 : i32
    return %c0_i32, %c0_i32_0 : i32, i32
  }
  func.func @transform_9(%arg0: i32, %arg1: i32) -> (i32, i32, i32) {
    %c0_i32 = arith.constant 0 : i32
    %c0_i32_0 = arith.constant 0 : i32
    %c0_i32_1 = arith.constant 0 : i32
    return %arg0, %c0_i32, %c0_i32_0 : i32, i32, i32
  }
}

module attributes {stable_mosaic.version = 11 : i64} {
  func.func @_ln_kernel(%arg0: i32, %arg1: memref<16x32xf32, #tpu.memory_space<vmem>>, %arg2: memref<1x32xf32, #tpu.memory_space<vmem>>, %arg3: memref<1x32xf32, #tpu.memory_space<vmem>>, %arg4: memref<16x32xf32, #tpu.memory_space<vmem>>) attributes {dimension_semantics = [#tpu.dimension_semantics<parallel>], iteration_bounds = array<i64: 1>, scalar_prefetch = 0 : i64, scratch_operands = 0 : i64, tpu.core_type = #tpu.core_type<tc>, window_params = [{transform_indices = @transform_0, window_bounds = array<i64: 16, 32>}, {pipeline_mode = #tpu.pipeline_mode<synchronous>, transform_indices = @transform_1, window_bounds = array<i64: 1, 32>}, {pipeline_mode = #tpu.pipeline_mode<synchronous>, transform_indices = @transform_2, window_bounds = array<i64: 1, 32>}, {transform_indices = @transform_3, window_bounds = array<i64: 16, 32>}]} {
    %c0 = arith.constant 0 : index
    %c0_0 = arith.constant 0 : index
    %0 = vector.load %arg1[%c0, %c0_0] : memref<16x32xf32, #tpu.memory_space<vmem>>, vector<16x32xf32>
    %c0_1 = arith.constant 0 : index
    %c0_2 = arith.constant 0 : index
    %1 = vector.load %arg2[%c0_1, %c0_2] : memref<1x32xf32, #tpu.memory_space<vmem>>, vector<1x32xf32>
    %c0_3 = arith.constant 0 : index
    %c0_4 = arith.constant 0 : index
    %2 = vector.load %arg3[%c0_3, %c0_4] : memref<1x32xf32, #tpu.memory_space<vmem>>, vector<1x32xf32>
    %cst = arith.constant dense<0.000000e+00> : vector<16xf32>
    %3 = vector.multi_reduction <add>, %0, %cst [1] : vector<16x32xf32> to vector<16xf32>
    %4 = vector.shape_cast %3 : vector<16xf32> to vector<16x1xf32>
    %cst_5 = arith.constant 3.200000e+01 : f32
    %5 = vector.broadcast %cst_5 : f32 to vector<16x1xf32>
    %6 = arith.divf %4, %5 : vector<16x1xf32>
    %7 = vector.broadcast %6 : vector<16x1xf32> to vector<16x32xf32>
    %8 = arith.subf %0, %7 : vector<16x32xf32>
    %9 = vector.broadcast %6 : vector<16x1xf32> to vector<16x32xf32>
    %10 = arith.subf %0, %9 : vector<16x32xf32>
    %11 = arith.mulf %8, %10 : vector<16x32xf32>
    %cst_6 = arith.constant dense<0.000000e+00> : vector<16xf32>
    %12 = vector.multi_reduction <add>, %11, %cst_6 [1] : vector<16x32xf32> to vector<16xf32>
    %13 = vector.shape_cast %12 : vector<16xf32> to vector<16x1xf32>
    %cst_7 = arith.constant 3.200000e+01 : f32
    %14 = vector.broadcast %cst_7 : f32 to vector<16x1xf32>
    %15 = arith.divf %13, %14 : vector<16x1xf32>
    %16 = vector.broadcast %6 : vector<16x1xf32> to vector<16x32xf32>
    %17 = arith.subf %0, %16 : vector<16x32xf32>
    %cst_8 = arith.constant 9.99999974E-6 : f32
    %18 = vector.broadcast %cst_8 : f32 to vector<16x1xf32>
    %19 = arith.addf %15, %18 : vector<16x1xf32>
    %20 = math.rsqrt %19 : vector<16x1xf32>
    %21 = vector.broadcast %20 : vector<16x1xf32> to vector<16x32xf32>
    %22 = arith.mulf %17, %21 : vector<16x32xf32>
    %23 = vector.broadcast %1 : vector<1x32xf32> to vector<16x32xf32>
    %24 = arith.mulf %22, %23 : vector<16x32xf32>
    %25 = vector.broadcast %2 : vector<1x32xf32> to vector<16x32xf32>
    %26 = arith.addf %24, %25 : vector<16x32xf32>
    %c0_9 = arith.constant 0 : index
    %c0_10 = arith.constant 0 : index
    %27 = vector.load %arg4[%c0_9, %c0_10] : memref<16x32xf32, #tpu.memory_space<vmem>>, vector<16x32xf32>
    tpu.vector_store %arg4[%c0_9, %c0_10], %26 {strides = array<i32>} : memref<16x32xf32, #tpu.memory_space<vmem>>, vector<16x32xf32>,
    return
  }
  func.func @transform_0(%arg0: i32) -> (i32, i32) {
    %c0_i32 = arith.constant 0 : i32
    %c0_i32_0 = arith.constant 0 : i32
    return %arg0, %c0_i32 : i32, i32
  }
  func.func @transform_1(%arg0: i32) -> (i32, i32) {
    %c0_i32 = arith.constant 0 : i32
    %c0_i32_0 = arith.constant 0 : i32
    %c0_i32_1 = arith.constant 0 : i32
    return %c0_i32, %c0_i32_0 : i32, i32
  }
  func.func @transform_2(%arg0: i32) -> (i32, i32) {
    %c0_i32 = arith.constant 0 : i32
    %c0_i32_0 = arith.constant 0 : i32
    %c0_i32_1 = arith.constant 0 : i32
    return %c0_i32, %c0_i32_0 : i32, i32
  }
  func.func @transform_3(%arg0: i32) -> (i32, i32) {
    %c0_i32 = arith.constant 0 : i32
    %c0_i32_0 = arith.constant 0 : i32
    return %arg0, %c0_i32 : i32, i32
  }
}

module attributes {stable_mosaic.version = 11 : i64} {
  func.func @_ffn_add_ln_kernel(%arg0: i32, %arg1: i32, %arg2: memref<16x32xf32, #tpu.memory_space<vmem>>, %arg3: memref<32x64xbf16, #tpu.memory_space<vmem>>, %arg4: memref<1x64xf32, #tpu.memory_space<vmem>>, %arg5: memref<64x32xbf16, #tpu.memory_space<vmem>>, %arg6: memref<1x32xf32, #tpu.memory_space<vmem>>, %arg7: memref<1x32xf32, #tpu.memory_space<vmem>>, %arg8: memref<1x32xf32, #tpu.memory_space<vmem>>, %arg9: memref<16x32xf32, #tpu.memory_space<vmem>>, %arg10: memref<16x32xf32, #tpu.memory_space<vmem>>) attributes {dimension_semantics = [#tpu.dimension_semantics<parallel>, #tpu.dimension_semantics<arbitrary>], iteration_bounds = array<i64: 1, 1>, scalar_prefetch = 0 : i64, scratch_operands = 1 : i64, tpu.core_type = #tpu.core_type<tc>, window_params = [{transform_indices = @transform_0, window_bounds = array<i64: 16, 32>}, {transform_indices = @transform_1, window_bounds = array<i64: 32, 64>}, {transform_indices = @transform_2, window_bounds = array<i64: 1, 64>}, {transform_indices = @transform_3, window_bounds = array<i64: 64, 32>}, {pipeline_mode = #tpu.pipeline_mode<synchronous>, transform_indices = @transform_4, window_bounds = array<i64: 1, 32>}, {pipeline_mode = #tpu.pipeline_mode<synchronous>, transform_indices = @transform_5, window_bounds = array<i64: 1, 32>}, {pipeline_mode = #tpu.pipeline_mode<synchronous>, transform_indices = @transform_6, window_bounds = array<i64: 1, 32>}, {transform_indices = @transform_7, window_bounds = array<i64: 16, 32>}]} {
    %c0_i32 = arith.constant 0 : i32
    %0 = arith.cmpi eq, %arg1, %c0_i32 : i32
    %1 = arith.extui %0 : i1 to i32
    %c0_i32_0 = arith.constant 0 : i32
    %2 = arith.cmpi ne, %1, %c0_i32_0 : i32
    scf.if %2 {
      %c0_16 = arith.constant 0 : index
      %c0_17 = arith.constant 0 : index
      %21 = vector.load %arg2[%c0_16, %c0_17] : memref<16x32xf32, #tpu.memory_space<vmem>>, vector<16x32xf32>
      %c0_18 = arith.constant 0 : index
      %c0_19 = arith.constant 0 : index
      %22 = vector.load %arg6[%c0_18, %c0_19] : memref<1x32xf32, #tpu.memory_space<vmem>>, vector<1x32xf32>
      %23 = vector.broadcast %22 : vector<1x32xf32> to vector<16x32xf32>
      %24 = arith.addf %21, %23 : vector<16x32xf32>
      %c0_20 = arith.constant 0 : index
      %c0_21 = arith.constant 0 : index
      %25 = vector.load %arg10[%c0_20, %c0_21] : memref<16x32xf32, #tpu.memory_space<vmem>>, vector<16x32xf32>
      tpu.vector_store %arg10[%c0_20, %c0_21], %24 {strides = array<i32>} : memref<16x32xf32, #tpu.memory_space<vmem>>, vector<16x32xf32>,
    } else {
    }
    %c0 = arith.constant 0 : index
    %c0_1 = arith.constant 0 : index
    %3 = vector.load %arg2[%c0, %c0_1] : memref<16x32xf32, #tpu.memory_space<vmem>>, vector<16x32xf32>
    %4 = arith.truncf %3 : vector<16x32xf32> to vector<16x32xbf16>
    %c0_2 = arith.constant 0 : index
    %c0_3 = arith.constant 0 : index
    %5 = vector.load %arg3[%c0_2, %c0_3] : memref<32x64xbf16, #tpu.memory_space<vmem>>, vector<32x64xbf16>
    %cst = arith.constant dense<0.000000e+00> : vector<16x64xf32>
    %6 = tpu.matmul %4, %5, %cst {dimension_numbers = #tpu.dot_dimension_numbers<[1], [0], [0], [1], [0, 0, 1, 1], [], []>} : vector<16x32xbf16>, vector<32x64xbf16>, vector<16x64xf32> -> vector<16x64xf32>
    %c0_4 = arith.constant 0 : index
    %c0_5 = arith.constant 0 : index
    %7 = vector.load %arg4[%c0_4, %c0_5] : memref<1x64xf32, #tpu.memory_space<vmem>>, vector<1x64xf32>
    %8 = vector.broadcast %7 : vector<1x64xf32> to vector<16x64xf32>
    %9 = arith.addf %6, %8 : vector<16x64xf32>
    %cst_6 = arith.constant 0.000000e+00 : f32
    %10 = vector.broadcast %cst_6 : f32 to vector<16x64xf32>
    %11 = arith.maximumf %9, %10 : vector<16x64xf32>
    %c0_7 = arith.constant 0 : index
    %c0_8 = arith.constant 0 : index
    %12 = vector.load %arg10[%c0_7, %c0_8] : memref<16x32xf32, #tpu.memory_space<vmem>>, vector<16x32xf32>
    %13 = arith.truncf %11 : vector<16x64xf32> to vector<16x64xbf16>
    %c0_9 = arith.constant 0 : index
    %c0_10 = arith.constant 0 : index
    %14 = vector.load %arg5[%c0_9, %c0_10] : memref<64x32xbf16, #tpu.memory_space<vmem>>, vector<64x32xbf16>
    %cst_11 = arith.constant dense<0.000000e+00> : vector<16x32xf32>
    %15 = tpu.matmul %13, %14, %cst_11 {dimension_numbers = #tpu.dot_dimension_numbers<[1], [0], [0], [1], [0, 0, 1, 1], [], []>} : vector<16x64xbf16>, vector<64x32xbf16>, vector<16x32xf32> -> vector<16x32xf32>
    %16 = arith.addf %12, %15 : vector<16x32xf32>
    %c0_12 = arith.constant 0 : index
    %c0_13 = arith.constant 0 : index
    %17 = vector.load %arg10[%c0_12, %c0_13] : memref<16x32xf32, #tpu.memory_space<vmem>>, vector<16x32xf32>
    tpu.vector_store %arg10[%c0_12, %c0_13], %16 {strides = array<i32>} : memref<16x32xf32, #tpu.memory_space<vmem>>, vector<16x32xf32>,
    %c0_i32_14 = arith.constant 0 : i32
    %18 = arith.cmpi eq, %arg1, %c0_i32_14 : i32
    %19 = arith.extui %18 : i1 to i32
    %c0_i32_15 = arith.constant 0 : i32
    %20 = arith.cmpi ne, %19, %c0_i32_15 : i32
    scf.if %20 {
      %c0_16 = arith.constant 0 : index
      %c0_17 = arith.constant 0 : index
      %21 = vector.load %arg10[%c0_16, %c0_17] : memref<16x32xf32, #tpu.memory_space<vmem>>, vector<16x32xf32>
      %c0_18 = arith.constant 0 : index
      %c0_19 = arith.constant 0 : index
      %22 = vector.load %arg7[%c0_18, %c0_19] : memref<1x32xf32, #tpu.memory_space<vmem>>, vector<1x32xf32>
      %c0_20 = arith.constant 0 : index
      %c0_21 = arith.constant 0 : index
      %23 = vector.load %arg8[%c0_20, %c0_21] : memref<1x32xf32, #tpu.memory_space<vmem>>, vector<1x32xf32>
      %cst_22 = arith.constant dense<0.000000e+00> : vector<16xf32>
      %24 = vector.multi_reduction <add>, %21, %cst_22 [1] : vector<16x32xf32> to vector<16xf32>
      %25 = vector.shape_cast %24 : vector<16xf32> to vector<16x1xf32>
      %cst_23 = arith.constant 3.200000e+01 : f32
      %26 = vector.broadcast %cst_23 : f32 to vector<16x1xf32>
      %27 = arith.divf %25, %26 : vector<16x1xf32>
      %28 = vector.broadcast %27 : vector<16x1xf32> to vector<16x32xf32>
      %29 = arith.subf %21, %28 : vector<16x32xf32>
      %30 = vector.broadcast %27 : vector<16x1xf32> to vector<16x32xf32>
      %31 = arith.subf %21, %30 : vector<16x32xf32>
      %32 = arith.mulf %29, %31 : vector<16x32xf32>
      %cst_24 = arith.constant dense<0.000000e+00> : vector<16xf32>
      %33 = vector.multi_reduction <add>, %32, %cst_24 [1] : vector<16x32xf32> to vector<16xf32>
      %34 = vector.shape_cast %33 : vector<16xf32> to vector<16x1xf32>
      %cst_25 = arith.constant 3.200000e+01 : f32
      %35 = vector.broadcast %cst_25 : f32 to vector<16x1xf32>
      %36 = arith.divf %34, %35 : vector<16x1xf32>
      %37 = vector.broadcast %27 : vector<16x1xf32> to vector<16x32xf32>
      %38 = arith.subf %21, %37 : vector<16x32xf32>
      %cst_26 = arith.constant 9.99999974E-6 : f32
      %39 = vector.broadcast %cst_26 : f32 to vector<16x1xf32>
      %40 = arith.addf %36, %39 : vector<16x1xf32>
      %41 = math.rsqrt %40 : vector<16x1xf32>
      %42 = vector.broadcast %41 : vector<16x1xf32> to vector<16x32xf32>
      %43 = arith.mulf %38, %42 : vector<16x32xf32>
      %44 = vector.broadcast %22 : vector<1x32xf32> to vector<16x32xf32>
      %45 = arith.mulf %43, %44 : vector<16x32xf32>
      %46 = vector.broadcast %23 : vector<1x32xf32> to vector<16x32xf32>
      %47 = arith.addf %45, %46 : vector<16x32xf32>
      %c0_27 = arith.constant 0 : index
      %c0_28 = arith.constant 0 : index
      %48 = vector.load %arg9[%c0_27, %c0_28] : memref<16x32xf32, #tpu.memory_space<vmem>>, vector<16x32xf32>
      tpu.vector_store %arg9[%c0_27, %c0_28], %47 {strides = array<i32>} : memref<16x32xf32, #tpu.memory_space<vmem>>, vector<16x32xf32>,
    } else {
    }
    return
  }
  func.func @transform_0(%arg0: i32, %arg1: i32) -> (i32, i32) {
    %c0_i32 = arith.constant 0 : i32
    %c0_i32_0 = arith.constant 0 : i32
    return %arg0, %c0_i32 : i32, i32
  }
  func.func @transform_1(%arg0: i32, %arg1: i32) -> (i32, i32) {
    %c0_i32 = arith.constant 0 : i32
    %c0_i32_0 = arith.constant 0 : i32
    return %c0_i32, %arg1 : i32, i32
  }
  func.func @transform_2(%arg0: i32, %arg1: i32) -> (i32, i32) {
    %c0_i32 = arith.constant 0 : i32
    %c0_i32_0 = arith.constant 0 : i32
    return %c0_i32, %arg1 : i32, i32
  }
  func.func @transform_3(%arg0: i32, %arg1: i32) -> (i32, i32) {
    %c0_i32 = arith.constant 0 : i32
    %c0_i32_0 = arith.constant 0 : i32
    return %arg1, %c0_i32 : i32, i32
  }
  func.func @transform_4(%arg0: i32, %arg1: i32) -> (i32, i32) {
    %c0_i32 = arith.constant 0 : i32
    %c0_i32_0 = arith.constant 0 : i32
    %c0_i32_1 = arith.constant 0 : i32
    return %c0_i32, %c0_i32_0 : i32, i32
  }
  func.func @transform_5(%arg0: i32, %arg1: i32) -> (i32, i32) {
    %c0_i32 = arith.constant 0 : i32
    %c0_i32_0 = arith.constant 0 : i32
    %c0_i32_1 = arith.constant 0 : i32
    return %c0_i32, %c0_i32_0 : i32, i32
  }
  func.func @transform_6(%arg0: i32, %arg1: i32) -> (i32, i32) {
    %c0_i32 = arith.constant 0 : i32
    %c0_i32_0 = arith.constant 0 : i32
    %c0_i32_1 = arith.constant 0 : i32
    return %c0_i32, %c0_i32_0 : i32, i32
  }
  func.func @transform_7(%arg0: i32, %arg1: i32) -> (i32, i32) {
    %c0_i32 = arith.constant 0 : i32
    %c0_i32_0 = arith.constant 0 : i32
    return %arg0, %c0_i32 : i32, i32
  }
}

</mosaic_0001>

<llo_original>
// kernel: decoder_forward.13
$region0: #{decoder_forward.13}
  #allocation0 [shape = 'u32[]', space=smem, size = 0x4, offset = 0x4, fixed_abs, tag = 'smem constant byte address 0x4 - core index']
  #allocation1 [shape = 'u32[144,128]{1,0:T(1,128)}', space=vmem, size = 0x12000, scoped, tag = 'internal scratch']
  %s0 = inlined_call_operand.vmem [shape: f32[16,32], index: 0, kind: input, shape index: {}]
  %s1 = inlined_call_operand.vmem [shape: f32[1,32], index: 1, kind: input, shape index: {}]
  %s2 = inlined_call_operand.vmem [shape: f32[1,32], index: 2, kind: input, shape index: {}]
  %s3 = inlined_call_operand.hbm [shape: f32[16,32], index: 3, kind: output, shape index: {}]
  %s4 = sld [smem:[#allocation0]]
  $region22: #{decoder_forward.13} parent=0
    _
  %s6 = ssub.s32 1, %s4
  %s7 = scalar_select 0, %s6, %s4
  $region1: #{decoder_forward.13} parent=0
    #allocation2 [shape = 'u8[8192]{0}', space=vmem, size = 0x2000, scoped, tag = 'output window, operand 0, single buffered']
    #allocation3 [shape = 's32[1]{0}', space=sflag, size = 0x4, scoped, tag = 'scoped memory for decoder_forward.13']
    %8 = vsyncpa [#allocation3], 0
    // Predicated region
    $region2: #{decoder_forward.13} parent=1 // pred_check
      _
    $region3: #{decoder_forward.13} parent=1 // pred_check_branch
      %10 = sbr.rel (0) target = $region5
    $region4: #{decoder_forward.13} parent=1 // pred_region
      _
    $region5: #{decoder_forward.13} parent=1 // pred_fallthru
      _
    // Predicated region
    $region6: #{decoder_forward.13} parent=1 // pred_check
      _
    $region7: #{decoder_forward.13} parent=1 // pred_check_branch
      %12 = sbr.rel (0) target = $region9
    $region8: #{decoder_forward.13} parent=1 // pred_region
      _
    $region9: #{decoder_forward.13} parent=1 // pred_fallthru
      _
    // Predicated region
    $region10: #{decoder_forward.13} parent=1 // pred_check
      _
    $region11: #{decoder_forward.13} parent=1 // pred_check_branch
      %14 = sbr.rel (0) target = $region13
    $region12: #{decoder_forward.13} parent=1 // pred_region
      _
    $region13: #{decoder_forward.13} parent=1 // pred_fallthru
      _
    %v15 = vld [vmem:[%s0] sm:$0xff]
    %v16 = vld [vmem:[%s0 + $0x8] sm:$0xff]
    %v17 = vld [vmem:[%s1] sm:$0x1]
    %v18 = vld [vmem:[%s2] sm:$0x1]
    %vm19 = vcmask 261120
    %v20 = vsel %vm19, %v15, 0.0
    %21 = vadd.xlane.f32.xlu0 %v20
    %v22 = vpop.xlane.xlu0 %21
    %v23 = vsel %vm19, %v16, 0.0
    %24 = vadd.xlane.f32.xlu0 %v23
    %v25 = vpop.xlane.xlu0 %24
    %v26 = vrcp.pop 32.0
    %v27 = vmul.f32 %v22, %v26
    %v28 = vmul.f32 %v25, %v26
    %v29 = vsub.f32 %v15, %v27
    %v30 = vsub.f32 %v16, %v28
    %v31 = vmul.f32 %v29, %v29
    %v32 = vmul.f32 %v30, %v30
    %v33 = vsel %vm19, %v31, 0.0
    %34 = vadd.xlane.f32.xlu0 %v33
    %v35 = vpop.xlane.xlu0 %34
    %v36 = vsel %vm19, %v32, 0.0
    %37 = vadd.xlane.f32.xlu0 %v36
    %v38 = vpop.xlane.xlu0 %37
    %v39 = vmul.f32 %v35, %v26
    %v40 = vmul.f32 %v38, %v26
    %v41 = vadd.f32 %v39, 1e-05
    %v42 = vadd.f32 %v40, 1e-05
    %v43 = vrsqrt.pop %v41
    %v44 = vrsqrt.pop %v42
    %v45 = vmul.f32 %v29, %v43
    %v46 = vmul.f32 %v30, %v44
    %v48 = vlaneseq
    %v49 = vshrl.u32 %v48, 7
    %v50 = vsub.s32 0, %v49
    %v51 = vrot.slane %v17, %v50
    %v53 = vmul.f32 %v45, %v51
    %v54 = vmul.f32 %v46, %v51
    %v56 = vlaneseq
    %v57 = vshrl.u32 %v56, 7
    %v58 = vsub.s32 0, %v57
    %v59 = vrot.slane %v18, %v58
    %v61 = vadd.f32 %v53, %v59
    %v62 = vadd.f32 %v54, %v59
    %63 = vst.msk [vmem:[#allocation2] sm:$0xff] %vm19, %v61
    %64 = vst.msk [vmem:[#allocation2 + $0x8] sm:$0xff] %vm19, %v62
    // Predicated region
    $region14: #{decoder_forward.13} parent=1 // pred_check
      _
    $region15: #{decoder_forward.13} parent=1 // pred_check_branch
      %66 = sbr.rel (0) target = $region17
    $region16: #{decoder_forward.13} parent=1 // pred_region
      %s68 = ssub.s32 256, 256
      %69 = vsyncadd [#allocation3], %s68
      %s70 = sshll.u32 [#allocation2], 4
      %s71 = int_to_ptr.vmem [resolvable:$true] %s70
      %76 = dma.vmem_to_hbm [thread:$0]  %s71, 256, %s3, [#allocation3], 128, 128, 8
    $region17: #{decoder_forward.13} parent=1 // pred_fallthru
      _
    // Predicated region
    $region18: #{decoder_forward.13} parent=1 // pred_check
      _
    $region19: #{decoder_forward.13} parent=1 // pred_check_branch
      %78 = sbr.rel (0) target = $region21
    $region20: #{decoder_forward.13} parent=1 // pred_region
      %79 = dma.done [#allocation3], 256
    $region21: #{decoder_forward.13} parent=1 // pred_fallthru
      _
    %80 = vsyncpa [#allocation3], 1

// kernel: decoder_forward.7
$region0: #{decoder_forward.7}
  #allocation0 [shape = 'u32[]', space=smem, size = 0x4, offset = 0x4, fixed_abs, tag = 'smem constant byte address 0x4 - core index']
  #allocation1 [shape = 'u32[144,128]{1,0:T(1,128)}', space=vmem, size = 0x12000, scoped, tag = 'internal scratch']
  #allocation2 [shape = 'f32[8,32]{1,0:T(8,128)}', space=vmem, size = 0x1000, scoped, tag = 'scratch operand']
  %s0 = inlined_call_operand.vmem [shape: f32[2,8,32], index: 0, kind: input, shape index: {}, may-alias: {0,1}]
  %s1 = inlined_call_operand.vmem [shape: f32[2,8,32], index: 1, kind: input, shape index: {}, may-alias: {0,1}]
  %s2 = inlined_call_operand.vmem [shape: bf16[4,32,24], index: 2, kind: input, shape index: {}]
  %s3 = inlined_call_operand.vmem [shape: f32[4,1,24], index: 3, kind: input, shape index: {}]
  %s4 = inlined_call_operand.vmem [shape: bf16[4,8,32], index: 4, kind: input, shape index: {}]
  %s5 = inlined_call_operand.vmem [shape: f32[1,32], index: 5, kind: input, shape index: {}]
  %s6 = inlined_call_operand.vmem [shape: f32[1,32], index: 6, kind: input, shape index: {}]
  %s7 = inlined_call_operand.vmem [shape: f32[1,32], index: 7, kind: input, shape index: {}]
  %s8 = inlined_call_operand.vmem [shape: f32[8,8], index: 8, kind: input, shape index: {}]
  %s9 = inlined_call_operand.vmem [shape: f32[2,8,32], index: 9, kind: output, shape index: {}]
  %s10 = sld [smem:[#allocation0]]
  $region77: #{decoder_forward.7} parent=0
    _
  %s12 = ssub.s32 1, %s10
  %s13 = scalar_select 0, %s12, %s10
  loop: start=0, step=1, limit=10
  $region2: #{decoder_forward.7} parent=0 // loop_pre_header
    _
  $region3: #{decoder_forward.7} parent=0 // loop_header
    %s15 = sphi 0, %s19
    %p16 = scmp.ge.s32.totalorder %s15, 10
    %s22 = sphi 0, %s34
    %s23 = sphi 0, %s30
    %s24 = sphi 0, %s22
    %s25 = sphi 0, %s23
    %s26 = sphi 0, %s24
    %s27 = sphi 0, %s25
    %s37 = sphi 0, %s39
    %s40 = sphi 0, %s37
    %s41 = sphi 0, %s40
    %s57 = sphi 0, %s41
    %s63 = sphi 0, %s65
    %s66 = sphi 0, %s63
    %s67 = sphi 0, %s66
    %s83 = sphi 0, %s67
    %s89 = sphi 0, %s91
    %s92 = sphi 0, %s89
    %s93 = sphi 0, %s92
    %s109 = sphi 0, %s93
    %s115 = sphi 0, %s117
    %s118 = sphi 0, %s115
    %s119 = sphi 0, %s118
    %s135 = sphi 0, %s119
    %s141 = sphi 0, %s143
    %s144 = sphi 0, %s141
    %s145 = sphi 0, %s144
    %s161 = sphi 0, %s145
    %s165 = sphi 0, %s165
    %s167 = sphi 0, %s165
    %s168 = sphi 0, %s167
    %s182 = sphi 0, %s168
    %s186 = sphi 0, %s186
    %s188 = sphi 0, %s186
    %s189 = sphi 0, %s188
    %s203 = sphi 0, %s189
    %s207 = sphi 0, %s207
    %s209 = sphi 0, %s207
    %s210 = sphi 0, %s209
    %s224 = sphi 0, %s210
    %s228 = sphi 0, %s228
    %s230 = sphi 0, %s228
    %s231 = sphi 0, %s230
    %s245 = sphi 0, %s231
    %s251 = sphi 0, %s253
    %s254 = sphi 0, %s251
    %s255 = sphi 0, %s254
    %s271 = sphi 0, %s255
  $region4: #{decoder_forward.7} parent=0 // loop_header_branch
    %18 = sbr.rel (%p16) target = $region8
  $region5: #{decoder_forward.7} parent=0 // loop_body
    %s20 = ssub.s32 %s15, 1
    %s21 = ssub.s32 %s15, 2
    %s28 = sadd.s32 1, %s23
    %p29 = scmp.ge.s32.totalorder %s28, 4
    %s30 = scalar_select %p29, 0, %s28
    %s31 = sadd.s32 1, %s22
    %s32 = scalar_select %p29, %s31, %s22
    %p33 = scmp.ge.s32.totalorder %s32, 2
    %s34 = scalar_select %p33, 0, %s32
    %s35 = ssub.s32 %s22, %s34
    %p36 = scmp.eq.s32.totalorder %s35, 0
    %s38 = sadd.s32 %s37, 1
    %s39 = scalar_select %p36, %s37, %s38
    %p42 = pneg %p36
    %p43 = scmp.eq.s32.totalorder %s15, 7
    %p44 = por %p42, %p43
    %p45 = scmp.ne.s32.totalorder %s37, %s40
    %p46 = scmp.eq.s32.totalorder %s15, 0
    %p47 = por %p45, %p46
    %p48 = scmp.ne.s32.totalorder %s37, %s40
    %p49 = scmp.eq.s32.totalorder %s20, 7
    %p50 = por %p48, %p49
    %p51 = scmp.ne.s32.totalorder %s40, %s41
    %p52 = scmp.eq.s32.totalorder %s20, 0
    %p53 = por %p51, %p52
    %p54 = scmp.ne.s32.totalorder %s40, %s41
    %p55 = scmp.eq.s32.totalorder %s21, 7
    %p56 = por %p54, %p55
    %p58 = scmp.ne.s32.totalorder %s41, %s57
    %p59 = scmp.eq.s32.totalorder %s21, 0
    %p60 = por %p58, %p59
    %s61 = ssub.s32 %s22, %s34
    %p62 = scmp.eq.s32.totalorder %s61, 0
    %s64 = sadd.s32 %s63, 1
    %s65 = scalar_select %p62, %s63, %s64
    %p68 = pneg %p62
    %p69 = scmp.eq.s32.totalorder %s15, 7
    %p70 = por %p68, %p69
    %p71 = scmp.ne.s32.totalorder %s63, %s66
    %p72 = scmp.eq.s32.totalorder %s15, 0
    %p73 = por %p71, %p72
    %p74 = scmp.ne.s32.totalorder %s63, %s66
    %p75 = scmp.eq.s32.totalorder %s20, 7
    %p76 = por %p74, %p75
    %p77 = scmp.ne.s32.totalorder %s66, %s67
    %p78 = scmp.eq.s32.totalorder %s20, 0
    %p79 = por %p77, %p78
    %p80 = scmp.ne.s32.totalorder %s66, %s67
    %p81 = scmp.eq.s32.totalorder %s21, 7
    %p82 = por %p80, %p81
    %p84 = scmp.ne.s32.totalorder %s67, %s83
    %p85 = scmp.eq.s32.totalorder %s21, 0
    %p86 = por %p84, %p85
    %s87 = ssub.s32 %s23, %s30
    %p88 = scmp.eq.s32.totalorder %s87, 0
    %s90 = sadd.s32 %s89, 1
    %s91 = scalar_select %p88, %s89, %s90
    %p94 = pneg %p88
    %p95 = scmp.eq.s32.totalorder %s15, 7
    %p96 = por %p94, %p95
    %p97 = scmp.ne.s32.totalorder %s89, %s92
    %p98 = scmp.eq.s32.totalorder %s15, 0
    %p99 = por %p97, %p98
    %p100 = scmp.ne.s32.totalorder %s89, %s92
    %p101 = scmp.eq.s32.totalorder %s20, 7
    %p102 = por %p100, %p101
    %p103 = scmp.ne.s32.totalorder %s92, %s93
    %p104 = scmp.eq.s32.totalorder %s20, 0
    %p105 = por %p103, %p104
    %p106 = scmp.ne.s32.totalorder %s92, %s93
    %p107 = scmp.eq.s32.totalorder %s21, 7
    %p108 = por %p106, %p107
    %p110 = scmp.ne.s32.totalorder %s93, %s109
    %p111 = scmp.eq.s32.totalorder %s21, 0
    %p112 = por %p110, %p111
    %s113 = ssub.s32 %s23, %s30
    %p114 = scmp.eq.s32.totalorder %s113, 0
    %s116 = sadd.s32 %s115, 1
    %s117 = scalar_select %p114, %s115, %s116
    %p120 = pneg %p114
    %p121 = scmp.eq.s32.totalorder %s15, 7
    %p122 = por %p120, %p121
    %p123 = scmp.ne.s32.totalorder %s115, %s118
    %p124 = scmp.eq.s32.totalorder %s15, 0
    %p125 = por %p123, %p124
    %p126 = scmp.ne.s32.totalorder %s115, %s118
    %p127 = scmp.eq.s32.totalorder %s20, 7
    %p128 = por %p126, %p127
    %p129 = scmp.ne.s32.totalorder %s118, %s119
    %p130 = scmp.eq.s32.totalorder %s20, 0
    %p131 = por %p129, %p130
    %p132 = scmp.ne.s32.totalorder %s118, %s119
    %p133 = scmp.eq.s32.totalorder %s21, 7
    %p134 = por %p132, %p133
    %p136 = scmp.ne.s32.totalorder %s119, %s135
    %p137 = scmp.eq.s32.totalorder %s21, 0
    %p138 = por %p136, %p137
    %s139 = ssub.s32 %s23, %s30
    %p140 = scmp.eq.s32.totalorder %s139, 0
    %s142 = sadd.s32 %s141, 1
    %s143 = scalar_select %p140, %s141, %s142
    %p146 = pneg %p140
    %p147 = scmp.eq.s32.totalorder %s15, 7
    %p148 = por %p146, %p147
    %p149 = scmp.ne.s32.totalorder %s141, %s144
    %p150 = scmp.eq.s32.totalorder %s15, 0
    %p151 = por %p149, %p150
    %p152 = scmp.ne.s32.totalorder %s141, %s144
    %p153 = scmp.eq.s32.totalorder %s20, 7
    %p154 = por %p152, %p153
    %p155 = scmp.ne.s32.totalorder %s144, %s145
    %p156 = scmp.eq.s32.totalorder %s20, 0
    %p157 = por %p155, %p156
    %p158 = scmp.ne.s32.totalorder %s144, %s145
    %p159 = scmp.eq.s32.totalorder %s21, 7
    %p160 = por %p158, %p159
    %p162 = scmp.ne.s32.totalorder %s145, %s161
    %p163 = scmp.eq.s32.totalorder %s21, 0
    %p164 = por %p162, %p163
    %s166 = sadd.s32 %s165, 1
    %p169 = scmp.eq.s32.totalorder %s15, 7
    %p170 = scmp.ne.s32.totalorder %s165, %s167
    %p171 = scmp.eq.s32.totalorder %s15, 0
    %p172 = por %p170, %p171
    %p173 = scmp.ne.s32.totalorder %s165, %s167
    %p174 = scmp.eq.s32.totalorder %s20, 7
    %p175 = por %p173, %p174
    %p176 = scmp.ne.s32.totalorder %s167, %s168
    %p177 = scmp.eq.s32.totalorder %s20, 0
    %p178 = por %p176, %p177
    %p179 = scmp.ne.s32.totalorder %s167, %s168
    %p180 = scmp.eq.s32.totalorder %s21, 7
    %p181 = por %p179, %p180
    %p183 = scmp.ne.s32.totalorder %s168, %s182
    %p184 = scmp.eq.s32.totalorder %s21, 0
    %p185 = por %p183, %p184
    %s187 = sadd.s32 %s186, 1
    %p190 = scmp.eq.s32.totalorder %s15, 7
    %p191 = scmp.ne.s32.totalorder %s186, %s188
    %p192 = scmp.eq.s32.totalorder %s15, 0
    %p193 = por %p191, %p192
    %p194 = scmp.ne.s32.totalorder %s186, %s188
    %p195 = scmp.eq.s32.totalorder %s20, 7
    %p196 = por %p194, %p195
    %p197 = scmp.ne.s32.totalorder %s188, %s189
    %p198 = scmp.eq.s32.totalorder %s20, 0
    %p199 = por %p197, %p198
    %p200 = scmp.ne.s32.totalorder %s188, %s189
    %p201 = scmp.eq.s32.totalorder %s21, 7
    %p202 = por %p200, %p201
    %p204 = scmp.ne.s32.totalorder %s189, %s203
    %p205 = scmp.eq.s32.totalorder %s21, 0
    %p206 = por %p204, %p205
    %s208 = sadd.s32 %s207, 1
    %p211 = scmp.eq.s32.totalorder %s15, 7
    %p212 = scmp.ne.s32.totalorder %s207, %s209
    %p213 = scmp.eq.s32.totalorder %s15, 0
    %p214 = por %p212, %p213
    %p215 = scmp.ne.s32.totalorder %s207, %s209
    %p216 = scmp.eq.s32.totalorder %s20, 7
    %p217 = por %p215, %p216
    %p218 = scmp.ne.s32.totalorder %s209, %s210
    %p219 = scmp.eq.s32.totalorder %s20, 0
    %p220 = por %p218, %p219
    %p221 = scmp.ne.s32.totalorder %s209, %s210
    %p222 = scmp.eq.s32.totalorder %s21, 7
    %p223 = por %p221, %p222
    %p225 = scmp.ne.s32.totalorder %s210, %s224
    %p226 = scmp.eq.s32.totalorder %s21, 0
    %p227 = por %p225, %p226
    %s229 = sadd.s32 %s228, 1
    %p232 = scmp.eq.s32.totalorder %s15, 7
    %p233 = scmp.ne.s32.totalorder %s228, %s230
    %p234 = scmp.eq.s32.totalorder %s15, 0
    %p235 = por %p233, %p234
    %p236 = scmp.ne.s32.totalorder %s228, %s230
    %p237 = scmp.eq.s32.totalorder %s20, 7
    %p238 = por %p236, %p237
    %p239 = scmp.ne.s32.totalorder %s230, %s231
    %p240 = scmp.eq.s32.totalorder %s20, 0
    %p241 = por %p239, %p240
    %p242 = scmp.ne.s32.totalorder %s230, %s231
    %p243 = scmp.eq.s32.totalorder %s21, 7
    %p244 = por %p242, %p243
    %p246 = scmp.ne.s32.totalorder %s231, %s245
    %p247 = scmp.eq.s32.totalorder %s21, 0
    %p248 = por %p246, %p247
    %s249 = ssub.s32 %s22, %s34
    %p250 = scmp.eq.s32.totalorder %s249, 0
    %s252 = sadd.s32 %s251, 1
    %s253 = scalar_select %p250, %s251, %s252
    %p256 = pneg %p250
    %p257 = scmp.eq.s32.totalorder %s15, 7
    %p258 = por %p256, %p257
    %p259 = scmp.ne.s32.totalorder %s251, %s254
    %p260 = scmp.eq.s32.totalorder %s15, 0
    %p261 = por %p259, %p260
    %p262 = scmp.ne.s32.totalorder %s251, %s254
    %p263 = scmp.eq.s32.totalorder %s20, 7
    %p264 = por %p262, %p263
    %p265 = scmp.ne.s32.totalorder %s254, %s255
    %p266 = scmp.eq.s32.totalorder %s20, 0
    %p267 = por %p265, %p266
    %p268 = scmp.ne.s32.totalorder %s254, %s255
    %p269 = scmp.eq.s32.totalorder %s21, 7
    %p270 = por %p268, %p269
    %p272 = scmp.ne.s32.totalorder %s255, %s271
    %p273 = scmp.eq.s32.totalorder %s21, 0
    %p274 = por %p272, %p273
    %p275 = scmp.le.s32.totalorder 1, %s15
    %p276 = scmp.lt.s32.totalorder %s15, 9
    %p277 = pnand %p275, %p276
    %p278 = pneg %p277
    // Predicated region
    $region9: #{decoder_forward.7} parent=5 // pred_check
      _
    $region10: #{decoder_forward.7} parent=5 // pred_check_branch
      %280 = sbr.rel (%p277) target = $region12
    $region11: #{decoder_forward.7} parent=5 // pred_region
      %s281 = ssub.s32 %s15, 1
      // Predicated region
      $region13: #{decoder_forward.7} parent=11 // pred_check
        %p282 = pneg %p178
      $region14: #{decoder_forward.7} parent=11 // pred_check_branch
        %284 = sbr.rel (%p282) target = $region16
      $region15: #{decoder_forward.7} parent=11 // pred_region
        _
      $region16: #{decoder_forward.7} parent=11 // pred_fallthru
        _
      // Predicated region
      $region17: #{decoder_forward.7} parent=11 // pred_check
        %p285 = pneg %p199
      $region18: #{decoder_forward.7} parent=11 // pred_check_branch
        %287 = sbr.rel (%p285) target = $region20
      $region19: #{decoder_forward.7} parent=11 // pred_region
        _
      $region20: #{decoder_forward.7} parent=11 // pred_fallthru
        _
      // Predicated region
      $region21: #{decoder_forward.7} parent=11 // pred_check
        %p288 = pneg %p220
      $region22: #{decoder_forward.7} parent=11 // pred_check_branch
        %290 = sbr.rel (%p288) target = $region24
      $region23: #{decoder_forward.7} parent=11 // pred_region
        _
      $region24: #{decoder_forward.7} parent=11 // pred_fallthru
        _
      // Predicated region
      $region25: #{decoder_forward.7} parent=11 // pred_check
        %p291 = pneg %p241
      $region26: #{decoder_forward.7} parent=11 // pred_check_branch
        %293 = sbr.rel (%p291) target = $region28
      $region27: #{decoder_forward.7} parent=11 // pred_region
        _
      $region28: #{decoder_forward.7} parent=11 // pred_fallthru
        _
    $region12: #{decoder_forward.7} parent=5 // pred_fallthru
      _
    %p294 = scmp.lt.s32.totalorder %s15, 8
    // Predicated region
    $region29: #{decoder_forward.7} parent=5 // pred_check
      %p295 = pneg %p294
    $region30: #{decoder_forward.7} parent=5 // pred_check_branch
      %297 = sbr.rel (%p295) target = $region32
    $region31: #{decoder_forward.7} parent=5 // pred_region
      // Predicated region
      $region33: #{decoder_forward.7} parent=31 // pred_check
        %p298 = pneg %p47
      $region34: #{decoder_forward.7} parent=31 // pred_check_branch
        %300 = sbr.rel (%p298) target = $region36
      $region35: #{decoder_forward.7} parent=31 // pred_region
        %p301 = scmp.lt.s32.totalorder %s22, 1
        %s302 = scalar_select %p301, %s22, 1
        %s303 = smul.addr %s302, 8
        %s304 = scalar_lea.vmem %s0, %s303
      $region36: #{decoder_forward.7} parent=31 // pred_fallthru
        _
      // Predicated region
      $region37: #{decoder_forward.7} parent=31 // pred_check
        %p305 = pneg %p73
      $region38: #{decoder_forward.7} parent=31 // pred_check_branch
        %307 = sbr.rel (%p305) target = $region40
      $region39: #{decoder_forward.7} parent=31 // pred_region
        %p308 = scmp.lt.s32.totalorder %s22, 1
        %s309 = scalar_select %p308, %s22, 1
        %s310 = smul.addr %s309, 8
        %s311 = scalar_lea.vmem %s1, %s310
      $region40: #{decoder_forward.7} parent=31 // pred_fallthru
        _
      // Predicated region
      $region41: #{decoder_forward.7} parent=31 // pred_check
        %p312 = pneg %p99
      $region42: #{decoder_forward.7} parent=31 // pred_check_branch
        %314 = sbr.rel (%p312) target = $region44
      $region43: #{decoder_forward.7} parent=31 // pred_region
        %p315 = scmp.lt.s32.totalorder %s23, 3
        %s316 = scalar_select %p315, %s23, 3
        %s317 = smul.addr %s316, 4
        %s318 = smul.addr %s317, 4
        %s319 = scalar_lea.vmem %s2, %s318
      $region44: #{decoder_forward.7} parent=31 // pred_fallthru
        _
      // Predicated region
      $region45: #{decoder_forward.7} parent=31 // pred_check
        %p320 = pneg %p125
      $region46: #{decoder_forward.7} parent=31 // pred_check_branch
        %322 = sbr.rel (%p320) target = $region48
      $region47: #{decoder_forward.7} parent=31 // pred_region
        %p323 = scmp.lt.s32.totalorder %s23, 3
        %s324 = scalar_select %p323, %s23, 3
        %s325 = scalar_lea.vmem %s3, %s324
      $region48: #{decoder_forward.7} parent=31 // pred_fallthru
        _
      // Predicated region
      $region49: #{decoder_forward.7} parent=31 // pred_check
        %p326 = pneg %p151
      $region50: #{decoder_forward.7} parent=31 // pred_check_branch
        %328 = sbr.rel (%p326) target = $region52
      $region51: #{decoder_forward.7} parent=31 // pred_region
        %p329 = scmp.lt.s32.totalorder %s23, 3
        %s330 = scalar_select %p329, %s23, 3
        %s331 = smul.addr %s330, 4
        %s332 = scalar_lea.vmem %s4, %s331
      $region52: #{decoder_forward.7} parent=31 // pred_fallthru
        _
    $region32: #{decoder_forward.7} parent=5 // pred_fallthru
      _
    %p333 = scmp.le.s32.totalorder 1, %s15
    %p334 = scmp.lt.s32.totalorder %s15, 9
    %p335 = pnand %p333, %p334
    %p336 = pneg %p335
    // Predicated region
    $region53: #{decoder_forward.7} parent=5 // pred_check
      _
    $region54: #{decoder_forward.7} parent=5 // pred_check_branch
      %338 = sbr.rel (%p335) target = $region56
    $region55: #{decoder_forward.7} parent=5 // pred_region
      %s339 = ssub.s32 %s15, 1
      %p340 = scmp.lt.s32.totalorder %s24, 1
      %s341 = scalar_select %p340, %s24, 1
      %s342 = smul.addr %s341, 8
      %s343 = scalar_lea.vmem %s0, %s342
      %p344 = pneg %p53
      %p345 = pneg %p50
      %p346 = scmp.lt.s32.totalorder %s24, 1
      %s347 = scalar_select %p346, %s24, 1
      %s348 = smul.addr %s347, 8
      %s349 = scalar_lea.vmem %s1, %s348
      %p350 = pneg %p79
      %p351 = pneg %p76
      %p352 = scmp.lt.s32.totalorder %s25, 3
      %s353 = scalar_select %p352, %s25, 3
      %s354 = smul.addr %s353, 4
      %s355 = smul.addr %s354, 4
      %s356 = scalar_lea.vmem %s2, %s355
      %p357 = pneg %p105
      %p358 = pneg %p102
      %p359 = scmp.lt.s32.totalorder %s25, 3
      %s360 = scalar_select %p359, %s25, 3
      %s361 = scalar_lea.vmem %s3, %s360
      %p362 = pneg %p131
      %p363 = pneg %p128
      %p364 = scmp.lt.s32.totalorder %s25, 3
      %s365 = scalar_select %p364, %s25, 3
      %s366 = smul.addr %s365, 4
      %s367 = scalar_lea.vmem %s4, %s366
      %p368 = pneg %p157
      %p369 = pneg %p154
      %p370 = pneg %p178
      %p371 = pneg %p175
      %p372 = pneg %p199
      %p373 = pneg %p196
      %p374 = pneg %p220
      %p375 = pneg %p217
      %p376 = pneg %p241
      %p377 = pneg %p238
      %p378 = pneg %p267
      %p379 = pneg %p264
      %p380 = scmp.lt.s32.totalorder %s24, 1
      %s381 = scalar_select %p380, %s24, 1
      %s382 = smul.addr %s381, 8
      %s383 = scalar_lea.vmem %s9, %s382
      %p384 = scmp.lt.s32.totalorder %s24, 1
      %s385 = scalar_select %p384, %s24, 1
      %s386 = smul.addr %s385, 8
      %s387 = scalar_lea.vmem %s0, %s386
      %p388 = scmp.lt.s32.totalorder %s24, 1
      %s389 = scalar_select %p388, %s24, 1
      %s390 = smul.addr %s389, 8
      %s391 = scalar_lea.vmem %s1, %s390
      %p392 = scmp.lt.s32.totalorder %s25, 3
      %s393 = scalar_select %p392, %s25, 3
      %s394 = smul.addr %s393, 4
      %s395 = smul.addr %s394, 4
      %s396 = scalar_lea.vmem %s2, %s395
      %p397 = scmp.lt.s32.totalorder %s25, 3
      %s398 = scalar_select %p397, %s25, 3
      %s399 = scalar_lea.vmem %s3, %s398
      %p400 = scmp.lt.s32.totalorder %s25, 3
      %s401 = scalar_select %p400, %s25, 3
      %s402 = smul.addr %s401, 4
      %s403 = scalar_lea.vmem %s4, %s402
      %p404 = scmp.lt.s32.totalorder %s24, 1
      %s405 = scalar_select %p404, %s24, 1
      %s406 = smul.addr %s405, 8
      %s407 = scalar_lea.vmem %s9, %s406
      %p409 = scmp.eq.s32.totalorder %s25, 0
      // Predicated region
      $region57: #{decoder_forward.7} parent=55 // pred_check
        %p410 = pneg %p409
      $region58: #{decoder_forward.7} parent=55 // pred_check_branch
        %412 = sbr.rel (%p410) target = $region60
      $region59: #{decoder_forward.7} parent=55 // pred_region
        %v413 = vld [vmem:[%s387] sm:$0xff]
        %v414 = vld [vmem:[%s5] sm:$0x1]
        %v416 = vlaneseq
        %v417 = vshrl.u32 %v416, 7
        %v418 = vsub.s32 0, %v417
        %v419 = vrot.slane %v414, %v418
        %v421 = vadd.f32 %v413, %v419
        %vm422 = vcmask 261120
        %423 = vst.msk [vmem:[#allocation2] sm:$0xff] %vm422, %v421
      $region60: #{decoder_forward.7} parent=55 // pred_fallthru
        _
      %v424 = vld [vmem:[%s387] sm:$0xff]
      %v425 = vpack.c.bf16 %v424, %v424
      %v426 = vld [vmem:[%s391] sm:$0xff]
      %v427 = vpack.c.bf16 %v426, %v426
      %v428 = vld [vmem:[%s396] sm:$0xf]
      %v429 = vld [vmem:[%s396 + $0x4] sm:$0xf]
      %v430 = vld [vmem:[%s396 + $0x8] sm:$0xf]
      %v431 = vld [vmem:[%s396 + $0xc] sm:$0xf]
      %v432 = vld [vmem:[%s399] sm:$0x1]
      %v434 = vlaneseq
      %v435 = vshrl.u32 %v434, 7
      %v436 = vsub.s32 0, %v435
      %v437 = vrot.slane %v432, %v436
      %v443 = vunpack.c.l.b16 %v428
      %v444 = vunpack.c.l.b16 %v429
      %v445 = vunpack.c.l.b16 %v430
      %v446 = vunpack.c.l.b16 %v431
      %v447 = vpack.c.b16 %v444, %v443
      %v448 = vpack.c.b16 %v446, %v445
      %vm451 = vcmask 261120
      %v453 = vsel %vm451, %v425, 0
      %455 = vmatprep.subr.bf16.mxu0 0
      %456 = vmatpush1.bf16.msra.mxu0 0
      %457 = vmatprep.subr.bf16.mxu0 0
      %458 = vmatpush1.bf16.msra.mxu0 0
      %459 = vmatprep.subr.bf16.mxu0 0
      %460 = vmatpush1.bf16.msra.mxu0 0
      %461 = vmatprep.subr.bf16.mxu0 0
      %462 = vmatpush1.bf16.msra.mxu0 0
      %463 = vmatprep.subr.bf16.mxu0 0
      %464 = vmatpush1.bf16.msra.mxu0 0
      %465 = vmatprep.subr.bf16.mxu0 0
      %466 = vmatpush1.bf16.msra.mxu0 0
      %467 = vmatprep.subr.bf16.mxu0 0
      %468 = vmatpush1.bf16.msra.mxu0 %v448
      %469 = vmatprep.subr.bf16.mxu0 0
      %470 = vmatpush1.bf16.msra.mxu0 %v447
      %471 = vmatprep.subr.bf16.mxu0 0
      %472 = vmatpush2.bf16.msra.mxu0 0
      %473 = vmatprep.subr.bf16.mxu0 0
      %474 = vmatpush2.bf16.msra.mxu0 0
      %475 = vmatprep.subr.bf16.mxu0 0
      %476 = vmatpush2.bf16.msra.mxu0 0
      %477 = vmatprep.subr.bf16.mxu0 0
      %478 = vmatpush2.bf16.msra.mxu0 0
      %479 = vmatprep.subr.bf16.mxu0 0
      %480 = vmatpush2.bf16.msra.mxu0 0
      %481 = vmatprep.subr.bf16.mxu0 0
      %482 = vmatpush2.bf16.msra.mxu0 0
      %483 = vmatprep.subr.bf16.mxu0 0
      %484 = vmatpush2.bf16.msra.mxu0 0
      %485 = vmatprep.subr.bf16.mxu0 0
      %486 = vmatpush2.bf16.msra.mxu0 0
      %487 = vmatprep.mubr.bf16.mxu0 0
      %488 = vmatmul.mubr.bf16.gmra.mxu0 %v453
      %v489 = vpop.f32.mrf.mxu0
      %v490 = vadd.f32 %v437, %v489
      %v491 = vpop.f32.mrf.mxu0
      %v492 = vpop.f32.mrf.mxu0
      %v493 = vpop.f32.mrf.mxu0
      %494 = vdwg.mxu0
      %v495 = vmul.f32 %v490, 0.35355338
      %496 = vrot.lane.b32.xlu0 %v447, 120
      %v497 = vpop.permute.xlu0 %496
      %498 = vrot.lane.b32.xlu0 %v448, 120
      %v499 = vpop.permute.xlu0 %498
      %502 = vrot.lane.b32.xlu0 %v437, 120
      %v503 = vpop.permute.xlu0 %502
      %v506 = vsel %vm451, %v427, 0
      %508 = vmatprep.subr.bf16.mxu0 0
      %509 = vmatpush1.bf16.msra.mxu0 0
      %510 = vmatprep.subr.bf16.mxu0 0
      %511 = vmatpush1.bf16.msra.mxu0 0
      %512 = vmatprep.subr.bf16.mxu0 0
      %513 = vmatpush1.bf16.msra.mxu0 0
      %514 = vmatprep.subr.bf16.mxu0 0
      %515 = vmatpush1.bf16.msra.mxu0 0
      %516 = vmatprep.subr.bf16.mxu0 0
      %517 = vmatpush1.bf16.msra.mxu0 0
      %518 = vmatprep.subr.bf16.mxu0 0
      %519 = vmatpush1.bf16.msra.mxu0 0
      %520 = vmatprep.subr.bf16.mxu0 0
      %521 = vmatpush1.bf16.msra.mxu0 %v499
      %522 = vmatprep.subr.bf16.mxu0 0
      %523 = vmatpush1.bf16.msra.mxu0 %v497
      %524 = vmatprep.subr.bf16.mxu0 0
      %525 = vmatpush2.bf16.msra.mxu0 0
      %526 = vmatprep.subr.bf16.mxu0 0
      %527 = vmatpush2.bf16.msra.mxu0 0
      %528 = vmatprep.subr.bf16.mxu0 0
      %529 = vmatpush2.bf16.msra.mxu0 0
      %530 = vmatprep.subr.bf16.mxu0 0
      %531 = vmatpush2.bf16.msra.mxu0 0
      %532 = vmatprep.subr.bf16.mxu0 0
      %533 = vmatpush2.bf16.msra.mxu0 0
      %534 = vmatprep.subr.bf16.mxu0 0
      %535 = vmatpush2.bf16.msra.mxu0 0
      %536 = vmatprep.subr.bf16.mxu0 0
      %537 = vmatpush2.bf16.msra.mxu0 0
      %538 = vmatprep.subr.bf16.mxu0 0
      %539 = vmatpush2.bf16.msra.mxu0 0
      %540 = vmatprep.mubr.bf16.mxu0 0
      %541 = vmatmul.mubr.bf16.gmra.mxu0 %v506
      %v542 = vpop.f32.mrf.mxu0
      %v543 = vadd.f32 %v503, %v542
      %v544 = vpop.f32.mrf.mxu0
      %v545 = vpop.f32.mrf.mxu0
      %v546 = vpop.f32.mrf.mxu0
      %547 = vdwg.mxu0
      %548 = vrot.lane.b32.xlu0 %v447, 112
      %v549 = vpop.permute.xlu0 %548
      %550 = vrot.lane.b32.xlu0 %v448, 112
      %v551 = vpop.permute.xlu0 %550
      %554 = vrot.lane.b32.xlu0 %v437, 112
      %v555 = vpop.permute.xlu0 %554
      %557 = vmatprep.subr.bf16.mxu0 0
      %558 = vmatpush1.bf16.msra.mxu0 0
      %559 = vmatprep.subr.bf16.mxu0 0
      %560 = vmatpush1.bf16.msra.mxu0 0
      %561 = vmatprep.subr.bf16.mxu0 0
      %562 = vmatpush1.bf16.msra.mxu0 0
      %563 = vmatprep.subr.bf16.mxu0 0
      %564 = vmatpush1.bf16.msra.mxu0 0
      %565 = vmatprep.subr.bf16.mxu0 0
      %566 = vmatpush1.bf16.msra.mxu0 0
      %567 = vmatprep.subr.bf16.mxu0 0
      %568 = vmatpush1.bf16.msra.mxu0 0
      %569 = vmatprep.subr.bf16.mxu0 0
      %570 = vmatpush1.bf16.msra.mxu0 %v551
      %571 = vmatprep.subr.bf16.mxu0 0
      %572 = vmatpush1.bf16.msra.mxu0 %v549
      %573 = vmatprep.subr.bf16.mxu0 0
      %574 = vmatpush2.bf16.msra.mxu0 0
      %575 = vmatprep.subr.bf16.mxu0 0
      %576 = vmatpush2.bf16.msra.mxu0 0
      %577 = vmatprep.subr.bf16.mxu0 0
      %578 = vmatpush2.bf16.msra.mxu0 0
      %579 = vmatprep.subr.bf16.mxu0 0
      %580 = vmatpush2.bf16.msra.mxu0 0
      %581 = vmatprep.subr.bf16.mxu0 0
      %582 = vmatpush2.bf16.msra.mxu0 0
      %583 = vmatprep.subr.bf16.mxu0 0
      %584 = vmatpush2.bf16.msra.mxu0 0
      %585 = vmatprep.subr.bf16.mxu0 0
      %586 = vmatpush2.bf16.msra.mxu0 0
      %587 = vmatprep.subr.bf16.mxu0 0
      %588 = vmatpush2.bf16.msra.mxu0 0
      %589 = vmatprep.mubr.bf16.mxu0 0
      %590 = vmatmul.mubr.bf16.gmra.mxu0 %v506
      %v591 = vpop.f32.mrf.mxu0
      %v592 = vadd.f32 %v555, %v591
      %v593 = vpop.f32.mrf.mxu0
      %v594 = vpop.f32.mrf.mxu0
      %v595 = vpop.f32.mrf.mxu0
      %596 = vdwg.mxu0
      %v597 = vpack.c.bf16 %v495, %v495
      %v598 = vpack.c.bf16 %v543, %v543
      %v599 = vld [vmem:[%s8] sm:$0xff]
      %vm600 = vcmask 64512
      %v602 = vsel %vm600, %v597, 0
      %v605 = vsel %vm600, %v598, 0
      %607 = vmatprep.subr.bf16.mxu0 0
      %608 = vmatpush1.bf16.xpose.msra.mxu0 0
      %609 = vmatprep.subr.bf16.mxu0 0
      %610 = vmatpush1.bf16.xpose.msra.mxu0 0
      %611 = vmatprep.subr.bf16.mxu0 0
      %612 = vmatpush1.bf16.xpose.msra.mxu0 0
      %613 = vmatprep.subr.bf16.mxu0 0
      %614 = vmatpush1.bf16.xpose.msra.mxu0 0
      %615 = vmatprep.subr.bf16.mxu0 0
      %616 = vmatpush1.bf16.xpose.msra.mxu0 0
      %617 = vmatprep.subr.bf16.mxu0 0
      %618 = vmatpush1.bf16.xpose.msra.mxu0 0
      %619 = vmatprep.subr.bf16.mxu0 0
      %620 = vmatpush1.bf16.xpose.msra.mxu0 0
      %621 = vmatprep.subr.bf16.mxu0 0
      %622 = vmatpush1.bf16.xpose.msra.mxu0 %v605
      %623 = vmatprep.subr.bf16.mxu0 0
      %624 = vmatpush2.bf16.xpose.msra.mxu0 0
      %625 = vmatprep.subr.bf16.mxu0 0
      %626 = vmatpush2.bf16.xpose.msra.mxu0 0
      %627 = vmatprep.subr.bf16.mxu0 0
      %628 = vmatpush2.bf16.xpose.msra.mxu0 0
      %629 = vmatprep.subr.bf16.mxu0 0
      %630 = vmatpush2.bf16.xpose.msra.mxu0 0
      %631 = vmatprep.subr.bf16.mxu0 0
      %632 = vmatpush2.bf16.xpose.msra.mxu0 0
      %633 = vmatprep.subr.bf16.mxu0 0
      %634 = vmatpush2.bf16.xpose.msra.mxu0 0
      %635 = vmatprep.subr.bf16.mxu0 0
      %636 = vmatpush2.bf16.xpose.msra.mxu0 0
      %637 = vmatprep.subr.bf16.mxu0 0
      %638 = vmatpush2.bf16.xpose.msra.mxu0 0
      %639 = vmatprep.mubr.bf16.mxu0 0
      %640 = vmatmul.mubr.bf16.gmra.mxu0 %v602
      %v641 = vpop.f32.mrf.mxu0
      %v642 = vadd.f32 %v599, %v641
      %v643 = vpop.f32.mrf.mxu0
      %v644 = vpop.f32.mrf.mxu0
      %v645 = vpop.f32.mrf.mxu0
      %646 = vdwg.mxu0
      %v647 = vsel %vm600, %v642, -inf
      %648 = vmax.xlane.f32.xlu0 %v647
      %v649 = vpop.xlane.xlu0 %648
      %v650 = vsub.f32 %v642, %v649
      %v651 = vmul.f32 %v650, 1.442695
      %v652 = vpow.pop %v651
      %v653 = vsel %vm600, %v652, 0.0
      %654 = vadd.xlane.f32.xlu0 %v653
      %v655 = vpop.xlane.xlu0 %654
      %v656 = vrcp.pop %v655
      %v657 = vmul.f32 %v652, %v656
      %v658 = vpack.c.bf16 %v657, %v657
      %v659 = vpack.c.bf16 %v592, %v592
      %v661 = vsel %vm600, %v658, 0
      %vm663 = vcmask 1043456
      %v665 = vsel %vm663, %v659, 0
      %667 = vmatprep.subr.bf16.mxu0 0
      %668 = vmatpush1.bf16.msra.mxu0 0
      %669 = vmatprep.subr.bf16.mxu0 0
      %670 = vmatpush1.bf16.msra.mxu0 0
      %671 = vmatprep.subr.bf16.mxu0 0
      %672 = vmatpush1.bf16.msra.mxu0 0
      %673 = vmatprep.subr.bf16.mxu0 0
      %674 = vmatpush1.bf16.msra.mxu0 0
      %675 = vmatprep.subr.bf16.mxu0 0
      %676 = vmatpush1.bf16.msra.mxu0 0
      %677 = vmatprep.subr.bf16.mxu0 0
      %678 = vmatpush1.bf16.msra.mxu0 0
      %679 = vmatprep.subr.bf16.mxu0 0
      %680 = vmatpush1.bf16.msra.mxu0 0
      %681 = vmatprep.subr.bf16.mxu0 0
      %682 = vmatpush1.bf16.msra.mxu0 %v665
      %683 = vmatprep.subr.bf16.mxu0 0
      %684 = vmatpush2.bf16.msra.mxu0 0
      %685 = vmatprep.subr.bf16.mxu0 0
      %686 = vmatpush2.bf16.msra.mxu0 0
      %687 = vmatprep.subr.bf16.mxu0 0
      %688 = vmatpush2.bf16.msra.mxu0 0
      %689 = vmatprep.subr.bf16.mxu0 0
      %690 = vmatpush2.bf16.msra.mxu0 0
      %691 = vmatprep.subr.bf16.mxu0 0
      %692 = vmatpush2.bf16.msra.mxu0 0
      %693 = vmatprep.subr.bf16.mxu0 0
      %694 = vmatpush2.bf16.msra.mxu0 0
      %695 = vmatprep.subr.bf16.mxu0 0
      %696 = vmatpush2.bf16.msra.mxu0 0
      %697 = vmatprep.subr.bf16.mxu0 0
      %698 = vmatpush2.bf16.msra.mxu0 0
      %699 = vmatprep.mubr.bf16.mxu0 0
      %700 = vmatmul.mubr.bf16.gmra.mxu0 %v661
      %v701 = vpop.f32.mrf.mxu0
      %v702 = vadd.f32 0.0, %v701
      %v703 = vpop.f32.mrf.mxu0
      %v704 = vpop.f32.mrf.mxu0
      %v705 = vpop.f32.mrf.mxu0
      %706 = vdwg.mxu0
      %v707 = vld [vmem:[#allocation2] sm:$0xff]
      %v708 = vpack.c.bf16 %v702, %v702
      %v709 = vld [vmem:[%s403] sm:$0xf]
      %v711 = vsel %vm600, %v708, 0
      %v714 = vsel %vm663, %v709, 0
      %716 = vmatprep.subr.bf16.mxu0 0
      %717 = vmatpush1.bf16.msra.mxu0 0
      %718 = vmatprep.subr.bf16.mxu0 0
      %719 = vmatpush1.bf16.msra.mxu0 0
      %720 = vmatprep.subr.bf16.mxu0 0
      %721 = vmatpush1.bf16.msra.mxu0 0
      %722 = vmatprep.subr.bf16.mxu0 0
      %723 = vmatpush1.bf16.msra.mxu0 0
      %724 = vmatprep.subr.bf16.mxu0 0
      %725 = vmatpush1.bf16.msra.mxu0 0
      %726 = vmatprep.subr.bf16.mxu0 0
      %727 = vmatpush1.bf16.msra.mxu0 0
      %728 = vmatprep.subr.bf16.mxu0 0
      %729 = vmatpush1.bf16.msra.mxu0 0
      %730 = vmatprep.subr.bf16.mxu0 0
      %731 = vmatpush1.bf16.msra.mxu0 %v714
      %732 = vmatprep.subr.bf16.mxu0 0
      %733 = vmatpush2.bf16.msra.mxu0 0
      %734 = vmatprep.subr.bf16.mxu0 0
      %735 = vmatpush2.bf16.msra.mxu0 0
      %736 = vmatprep.subr.bf16.mxu0 0
      %737 = vmatpush2.bf16.msra.mxu0 0
      %738 = vmatprep.subr.bf16.mxu0 0
      %739 = vmatpush2.bf16.msra.mxu0 0
      %740 = vmatprep.subr.bf16.mxu0 0
      %741 = vmatpush2.bf16.msra.mxu0 0
      %742 = vmatprep.subr.bf16.mxu0 0
      %743 = vmatpush2.bf16.msra.mxu0 0
      %744 = vmatprep.subr.bf16.mxu0 0
      %745 = vmatpush2.bf16.msra.mxu0 0
      %746 = vmatprep.subr.bf16.mxu0 0
      %747 = vmatpush2.bf16.msra.mxu0 0
      %748 = vmatprep.mubr.bf16.mxu0 0
      %749 = vmatmul.mubr.bf16.gmra.mxu0 %v711
      %v750 = vpop.f32.mrf.mxu0
      %v751 = vadd.f32 0.0, %v750
      %v752 = vpop.f32.mrf.mxu0
      %v753 = vpop.f32.mrf.mxu0
      %v754 = vpop.f32.mrf.mxu0
      %755 = vdwg.mxu0
      %v756 = vadd.f32 %v707, %v751
      %757 = vst.msk [vmem:[#allocation2] sm:$0xff] %vm451, %v756
      %p758 = scmp.eq.s32.totalorder %s25, 3
      // Predicated region
      $region61: #{decoder_forward.7} parent=55 // pred_check
        %p759 = pneg %p758
      $region62: #{decoder_forward.7} parent=55 // pred_check_branch
        %761 = sbr.rel (%p759) target = $region64
      $region63: #{decoder_forward.7} parent=55 // pred_region
        %v762 = vld [vmem:[#allocation2] sm:$0xff]
        %v763 = vld [vmem:[%s6] sm:$0x1]
        %v764 = vld [vmem:[%s7] sm:$0x1]
        %v765 = vsel %vm451, %v762, 0.0
        %766 = vadd.xlane.f32.xlu0 %v765
        %v767 = vpop.xlane.xlu0 %766
        %v768 = vrcp.pop 32.0
        %v769 = vmul.f32 %v767, %v768
        %v770 = vsub.f32 %v762, %v769
        %v771 = vmul.f32 %v770, %v770
        %v772 = vsel %vm451, %v771, 0.0
        %773 = vadd.xlane.f32.xlu0 %v772
        %v774 = vpop.xlane.xlu0 %773
        %v775 = vmul.f32 %v774, %v768
        %v776 = vadd.f32 %v775, 1e-05
        %v777 = vrsqrt.pop %v776
        %v778 = vmul.f32 %v770, %v777
        %v780 = vlaneseq
        %v781 = vshrl.u32 %v780, 7
        %v782 = vsub.s32 0, %v781
        %v783 = vrot.slane %v763, %v782
        %v785 = vmul.f32 %v778, %v783
        %v787 = vlaneseq
        %v788 = vshrl.u32 %v787, 7
        %v789 = vsub.s32 0, %v788
        %v790 = vrot.slane %v764, %v789
        %v792 = vadd.f32 %v785, %v790
        %793 = vst.msk [vmem:[%s407] sm:$0xff] %vm451, %v792
      $region64: #{decoder_forward.7} parent=55 // pred_fallthru
        _
      %p794 = scmp.lt.s32.totalorder %s24, 1
      %s795 = scalar_select %p794, %s24, 1
      %s796 = smul.addr %s795, 8
      %s797 = scalar_lea.vmem %s9, %s796
      // Predicated region
      $region65: #{decoder_forward.7} parent=55 // pred_check
        %p798 = pneg %p264
      $region66: #{decoder_forward.7} parent=55 // pred_check_branch
        %800 = sbr.rel (%p798) target = $region68
      $region67: #{decoder_forward.7} parent=55 // pred_region
        _
      $region68: #{decoder_forward.7} parent=55 // pred_fallthru
        _
    $region56: #{decoder_forward.7} parent=5 // pred_fallthru
      _
    %p801 = scmp.le.s32.totalorder 2, %s15
    // Predicated region
    $region69: #{decoder_forward.7} parent=5 // pred_check
      %p802 = pneg %p801
    $region70: #{decoder_forward.7} parent=5 // pred_check_branch
      %804 = sbr.rel (%p802) target = $region72
    $region71: #{decoder_forward.7} parent=5 // pred_region
      %s805 = ssub.s32 %s15, 2
      // Predicated region
      $region73: #{decoder_forward.7} parent=71 // pred_check
        %p806 = pneg %p270
      $region74: #{decoder_forward.7} parent=71 // pred_check_branch
        %808 = sbr.rel (%p806) target = $region76
      $region75: #{decoder_forward.7} parent=71 // pred_region
        %p809 = scmp.lt.s32.totalorder %s26, 1
        %s810 = scalar_select %p809, %s26, 1
        %s811 = smul.addr %s810, 8
        %s812 = scalar_lea.vmem %s9, %s811
      $region76: #{decoder_forward.7} parent=71 // pred_fallthru
        _
    $region72: #{decoder_forward.7} parent=5 // pred_fallthru
      _
  $region6: #{decoder_forward.7} parent=0 // loop_footer
    %s19 = sadd.s32 1, %s15
  $region7: #{decoder_forward.7} parent=0 // loop_footer_branch
    %14 = sbr.rel target = $region3
  $region8: #{decoder_forward.7} parent=0 // loop_exit
    _

// kernel: decoder_forward.8
$region0: #{decoder_forward.8}
  #allocation0 [shape = 'u32[]', space=smem, size = 0x4, offset = 0x4, fixed_abs, tag = 'smem constant byte address 0x4 - core index']
  #allocation1 [shape = 'u32[144,128]{1,0:T(1,128)}', space=vmem, size = 0x12000, scoped, tag = 'internal scratch']
  #allocation2 [shape = 'f32[8,32]{1,0:T(8,128)}', space=vmem, size = 0x1000, scoped, tag = 'scratch operand']
  %s0 = inlined_call_operand.vmem [shape: f32[2,8,32], index: 0, kind: input, shape index: {}]
  %s1 = inlined_call_operand.vmem [shape: f32[2,8,32], index: 1, kind: input, shape index: {}]
  %s2 = inlined_call_operand.vmem [shape: bf16[4,32,24], index: 2, kind: input, shape index: {}]
  %s3 = inlined_call_operand.vmem [shape: f32[4,1,24], index: 3, kind: input, shape index: {}]
  %s4 = inlined_call_operand.vmem [shape: bf16[4,8,32], index: 4, kind: input, shape index: {}]
  %s5 = inlined_call_operand.vmem [shape: f32[1,32], index: 5, kind: input, shape index: {}]
  %s6 = inlined_call_operand.vmem [shape: f32[1,32], index: 6, kind: input, shape index: {}]
  %s7 = inlined_call_operand.vmem [shape: f32[1,32], index: 7, kind: input, shape index: {}]
  %s8 = inlined_call_operand.vmem [shape: f32[2,8,32], index: 8, kind: output, shape index: {}]
  %s9 = sld [smem:[#allocation0]]
  $region73: #{decoder_forward.8} parent=0
    _
  %s11 = ssub.s32 1, %s9
  %s12 = scalar_select 0, %s11, %s9
  loop: start=0, step=1, limit=10
  $region2: #{decoder_forward.8} parent=0 // loop_pre_header
    _
  $region3: #{decoder_forward.8} parent=0 // loop_header
    %s14 = sphi 0, %s18
    %p15 = scmp.ge.s32.totalorder %s14, 10
    %s21 = sphi 0, %s33
    %s22 = sphi 0, %s29
    %s23 = sphi 0, %s21
    %s24 = sphi 0, %s22
    %s25 = sphi 0, %s23
    %s26 = sphi 0, %s24
    %s36 = sphi 0, %s38
    %s39 = sphi 0, %s36
    %s40 = sphi 0, %s39
    %s56 = sphi 0, %s40
    %s62 = sphi 0, %s64
    %s65 = sphi 0, %s62
    %s66 = sphi 0, %s65
    %s82 = sphi 0, %s66
    %s88 = sphi 0, %s90
    %s91 = sphi 0, %s88
    %s92 = sphi 0, %s91
    %s108 = sphi 0, %s92
    %s114 = sphi 0, %s116
    %s117 = sphi 0, %s114
    %s118 = sphi 0, %s117
    %s134 = sphi 0, %s118
    %s140 = sphi 0, %s142
    %s143 = sphi 0, %s140
    %s144 = sphi 0, %s143
    %s160 = sphi 0, %s144
    %s164 = sphi 0, %s164
    %s166 = sphi 0, %s164
    %s167 = sphi 0, %s166
    %s181 = sphi 0, %s167
    %s185 = sphi 0, %s185
    %s187 = sphi 0, %s185
    %s188 = sphi 0, %s187
    %s202 = sphi 0, %s188
    %s206 = sphi 0, %s206
    %s208 = sphi 0, %s206
    %s209 = sphi 0, %s208
    %s223 = sphi 0, %s209
    %s229 = sphi 0, %s231
    %s232 = sphi 0, %s229
    %s233 = sphi 0, %s232
    %s249 = sphi 0, %s233
  $region4: #{decoder_forward.8} parent=0 // loop_header_branch
    %17 = sbr.rel (%p15) target = $region8
  $region5: #{decoder_forward.8} parent=0 // loop_body
    %s19 = ssub.s32 %s14, 1
    %s20 = ssub.s32 %s14, 2
    %s27 = sadd.s32 1, %s22
    %p28 = scmp.ge.s32.totalorder %s27, 4
    %s29 = scalar_select %p28, 0, %s27
    %s30 = sadd.s32 1, %s21
    %s31 = scalar_select %p28, %s30, %s21
    %p32 = scmp.ge.s32.totalorder %s31, 2
    %s33 = scalar_select %p32, 0, %s31
    %s34 = ssub.s32 %s21, %s33
    %p35 = scmp.eq.s32.totalorder %s34, 0
    %s37 = sadd.s32 %s36, 1
    %s38 = scalar_select %p35, %s36, %s37
    %p41 = pneg %p35
    %p42 = scmp.eq.s32.totalorder %s14, 7
    %p43 = por %p41, %p42
    %p44 = scmp.ne.s32.totalorder %s36, %s39
    %p45 = scmp.eq.s32.totalorder %s14, 0
    %p46 = por %p44, %p45
    %p47 = scmp.ne.s32.totalorder %s36, %s39
    %p48 = scmp.eq.s32.totalorder %s19, 7
    %p49 = por %p47, %p48
    %p50 = scmp.ne.s32.totalorder %s39, %s40
    %p51 = scmp.eq.s32.totalorder %s19, 0
    %p52 = por %p50, %p51
    %p53 = scmp.ne.s32.totalorder %s39, %s40
    %p54 = scmp.eq.s32.totalorder %s20, 7
    %p55 = por %p53, %p54
    %p57 = scmp.ne.s32.totalorder %s40, %s56
    %p58 = scmp.eq.s32.totalorder %s20, 0
    %p59 = por %p57, %p58
    %s60 = ssub.s32 %s21, %s33
    %p61 = scmp.eq.s32.totalorder %s60, 0
    %s63 = sadd.s32 %s62, 1
    %s64 = scalar_select %p61, %s62, %s63
    %p67 = pneg %p61
    %p68 = scmp.eq.s32.totalorder %s14, 7
    %p69 = por %p67, %p68
    %p70 = scmp.ne.s32.totalorder %s62, %s65
    %p71 = scmp.eq.s32.totalorder %s14, 0
    %p72 = por %p70, %p71
    %p73 = scmp.ne.s32.totalorder %s62, %s65
    %p74 = scmp.eq.s32.totalorder %s19, 7
    %p75 = por %p73, %p74
    %p76 = scmp.ne.s32.totalorder %s65, %s66
    %p77 = scmp.eq.s32.totalorder %s19, 0
    %p78 = por %p76, %p77
    %p79 = scmp.ne.s32.totalorder %s65, %s66
    %p80 = scmp.eq.s32.totalorder %s20, 7
    %p81 = por %p79, %p80
    %p83 = scmp.ne.s32.totalorder %s66, %s82
    %p84 = scmp.eq.s32.totalorder %s20, 0
    %p85 = por %p83, %p84
    %s86 = ssub.s32 %s22, %s29
    %p87 = scmp.eq.s32.totalorder %s86, 0
    %s89 = sadd.s32 %s88, 1
    %s90 = scalar_select %p87, %s88, %s89
    %p93 = pneg %p87
    %p94 = scmp.eq.s32.totalorder %s14, 7
    %p95 = por %p93, %p94
    %p96 = scmp.ne.s32.totalorder %s88, %s91
    %p97 = scmp.eq.s32.totalorder %s14, 0
    %p98 = por %p96, %p97
    %p99 = scmp.ne.s32.totalorder %s88, %s91
    %p100 = scmp.eq.s32.totalorder %s19, 7
    %p101 = por %p99, %p100
    %p102 = scmp.ne.s32.totalorder %s91, %s92
    %p103 = scmp.eq.s32.totalorder %s19, 0
    %p104 = por %p102, %p103
    %p105 = scmp.ne.s32.totalorder %s91, %s92
    %p106 = scmp.eq.s32.totalorder %s20, 7
    %p107 = por %p105, %p106
    %p109 = scmp.ne.s32.totalorder %s92, %s108
    %p110 = scmp.eq.s32.totalorder %s20, 0
    %p111 = por %p109, %p110
    %s112 = ssub.s32 %s22, %s29
    %p113 = scmp.eq.s32.totalorder %s112, 0
    %s115 = sadd.s32 %s114, 1
    %s116 = scalar_select %p113, %s114, %s115
    %p119 = pneg %p113
    %p120 = scmp.eq.s32.totalorder %s14, 7
    %p121 = por %p119, %p120
    %p122 = scmp.ne.s32.totalorder %s114, %s117
    %p123 = scmp.eq.s32.totalorder %s14, 0
    %p124 = por %p122, %p123
    %p125 = scmp.ne.s32.totalorder %s114, %s117
    %p126 = scmp.eq.s32.totalorder %s19, 7
    %p127 = por %p125, %p126
    %p128 = scmp.ne.s32.totalorder %s117, %s118
    %p129 = scmp.eq.s32.totalorder %s19, 0
    %p130 = por %p128, %p129
    %p131 = scmp.ne.s32.totalorder %s117, %s118
    %p132 = scmp.eq.s32.totalorder %s20, 7
    %p133 = por %p131, %p132
    %p135 = scmp.ne.s32.totalorder %s118, %s134
    %p136 = scmp.eq.s32.totalorder %s20, 0
    %p137 = por %p135, %p136
    %s138 = ssub.s32 %s22, %s29
    %p139 = scmp.eq.s32.totalorder %s138, 0
    %s141 = sadd.s32 %s140, 1
    %s142 = scalar_select %p139, %s140, %s141
    %p145 = pneg %p139
    %p146 = scmp.eq.s32.totalorder %s14, 7
    %p147 = por %p145, %p146
    %p148 = scmp.ne.s32.totalorder %s140, %s143
    %p149 = scmp.eq.s32.totalorder %s14, 0
    %p150 = por %p148, %p149
    %p151 = scmp.ne.s32.totalorder %s140, %s143
    %p152 = scmp.eq.s32.totalorder %s19, 7
    %p153 = por %p151, %p152
    %p154 = scmp.ne.s32.totalorder %s143, %s144
    %p155 = scmp.eq.s32.totalorder %s19, 0
    %p156 = por %p154, %p155
    %p157 = scmp.ne.s32.totalorder %s143, %s144
    %p158 = scmp.eq.s32.totalorder %s20, 7
    %p159 = por %p157, %p158
    %p161 = scmp.ne.s32.totalorder %s144, %s160
    %p162 = scmp.eq.s32.totalorder %s20, 0
    %p163 = por %p161, %p162
    %s165 = sadd.s32 %s164, 1
    %p168 = scmp.eq.s32.totalorder %s14, 7
    %p169 = scmp.ne.s32.totalorder %s164, %s166
    %p170 = scmp.eq.s32.totalorder %s14, 0
    %p171 = por %p169, %p170
    %p172 = scmp.ne.s32.totalorder %s164, %s166
    %p173 = scmp.eq.s32.totalorder %s19, 7
    %p174 = por %p172, %p173
    %p175 = scmp.ne.s32.totalorder %s166, %s167
    %p176 = scmp.eq.s32.totalorder %s19, 0
    %p177 = por %p175, %p176
    %p178 = scmp.ne.s32.totalorder %s166, %s167
    %p179 = scmp.eq.s32.totalorder %s20, 7
    %p180 = por %p178, %p179
    %p182 = scmp.ne.s32.totalorder %s167, %s181
    %p183 = scmp.eq.s32.totalorder %s20, 0
    %p184 = por %p182, %p183
    %s186 = sadd.s32 %s185, 1
    %p189 = scmp.eq.s32.totalorder %s14, 7
    %p190 = scmp.ne.s32.totalorder %s185, %s187
    %p191 = scmp.eq.s32.totalorder %s14, 0
    %p192 = por %p190, %p191
    %p193 = scmp.ne.s32.totalorder %s185, %s187
    %p194 = scmp.eq.s32.totalorder %s19, 7
    %p195 = por %p193, %p194
    %p196 = scmp.ne.s32.totalorder %s187, %s188
    %p197 = scmp.eq.s32.totalorder %s19, 0
    %p198 = por %p196, %p197
    %p199 = scmp.ne.s32.totalorder %s187, %s188
    %p200 = scmp.eq.s32.totalorder %s20, 7
    %p201 = por %p199, %p200
    %p203 = scmp.ne.s32.totalorder %s188, %s202
    %p204 = scmp.eq.s32.totalorder %s20, 0
    %p205 = por %p203, %p204
    %s207 = sadd.s32 %s206, 1
    %p210 = scmp.eq.s32.totalorder %s14, 7
    %p211 = scmp.ne.s32.totalorder %s206, %s208
    %p212 = scmp.eq.s32.totalorder %s14, 0
    %p213 = por %p211, %p212
    %p214 = scmp.ne.s32.totalorder %s206, %s208
    %p215 = scmp.eq.s32.totalorder %s19, 7
    %p216 = por %p214, %p215
    %p217 = scmp.ne.s32.totalorder %s208, %s209
    %p218 = scmp.eq.s32.totalorder %s19, 0
    %p219 = por %p217, %p218
    %p220 = scmp.ne.s32.totalorder %s208, %s209
    %p221 = scmp.eq.s32.totalorder %s20, 7
    %p222 = por %p220, %p221
    %p224 = scmp.ne.s32.totalorder %s209, %s223
    %p225 = scmp.eq.s32.totalorder %s20, 0
    %p226 = por %p224, %p225
    %s227 = ssub.s32 %s21, %s33
    %p228 = scmp.eq.s32.totalorder %s227, 0
    %s230 = sadd.s32 %s229, 1
    %s231 = scalar_select %p228, %s229, %s230
    %p234 = pneg %p228
    %p235 = scmp.eq.s32.totalorder %s14, 7
    %p236 = por %p234, %p235
    %p237 = scmp.ne.s32.totalorder %s229, %s232
    %p238 = scmp.eq.s32.totalorder %s14, 0
    %p239 = por %p237, %p238
    %p240 = scmp.ne.s32.totalorder %s229, %s232
    %p241 = scmp.eq.s32.totalorder %s19, 7
    %p242 = por %p240, %p241
    %p243 = scmp.ne.s32.totalorder %s232, %s233
    %p244 = scmp.eq.s32.totalorder %s19, 0
    %p245 = por %p243, %p244
    %p246 = scmp.ne.s32.totalorder %s232, %s233
    %p247 = scmp.eq.s32.totalorder %s20, 7
    %p248 = por %p246, %p247
    %p250 = scmp.ne.s32.totalorder %s233, %s249
    %p251 = scmp.eq.s32.totalorder %s20, 0
    %p252 = por %p250, %p251
    %p253 = scmp.le.s32.totalorder 1, %s14
    %p254 = scmp.lt.s32.totalorder %s14, 9
    %p255 = pnand %p253, %p254
    %p256 = pneg %p255
    // Predicated region
    $region9: #{decoder_forward.8} parent=5 // pred_check
      _
    $region10: #{decoder_forward.8} parent=5 // pred_check_branch
      %258 = sbr.rel (%p255) target = $region12
    $region11: #{decoder_forward.8} parent=5 // pred_region
      %s259 = ssub.s32 %s14, 1
      // Predicated region
      $region13: #{decoder_forward.8} parent=11 // pred_check
        %p260 = pneg %p177
      $region14: #{decoder_forward.8} parent=11 // pred_check_branch
        %262 = sbr.rel (%p260) target = $region16
      $region15: #{decoder_forward.8} parent=11 // pred_region
        _
      $region16: #{decoder_forward.8} parent=11 // pred_fallthru
        _
      // Predicated region
      $region17: #{decoder_forward.8} parent=11 // pred_check
        %p263 = pneg %p198
      $region18: #{decoder_forward.8} parent=11 // pred_check_branch
        %265 = sbr.rel (%p263) target = $region20
      $region19: #{decoder_forward.8} parent=11 // pred_region
        _
      $region20: #{decoder_forward.8} parent=11 // pred_fallthru
        _
      // Predicated region
      $region21: #{decoder_forward.8} parent=11 // pred_check
        %p266 = pneg %p219
      $region22: #{decoder_forward.8} parent=11 // pred_check_branch
        %268 = sbr.rel (%p266) target = $region24
      $region23: #{decoder_forward.8} parent=11 // pred_region
        _
      $region24: #{decoder_forward.8} parent=11 // pred_fallthru
        _
    $region12: #{decoder_forward.8} parent=5 // pred_fallthru
      _
    %p269 = scmp.lt.s32.totalorder %s14, 8
    // Predicated region
    $region25: #{decoder_forward.8} parent=5 // pred_check
      %p270 = pneg %p269
    $region26: #{decoder_forward.8} parent=5 // pred_check_branch
      %272 = sbr.rel (%p270) target = $region28
    $region27: #{decoder_forward.8} parent=5 // pred_region
      // Predicated region
      $region29: #{decoder_forward.8} parent=27 // pred_check
        %p273 = pneg %p46
      $region30: #{decoder_forward.8} parent=27 // pred_check_branch
        %275 = sbr.rel (%p273) target = $region32
      $region31: #{decoder_forward.8} parent=27 // pred_region
        %p276 = scmp.lt.s32.totalorder %s21, 1
        %s277 = scalar_select %p276, %s21, 1
        %s278 = smul.addr %s277, 8
        %s279 = scalar_lea.vmem %s0, %s278
      $region32: #{decoder_forward.8} parent=27 // pred_fallthru
        _
      // Predicated region
      $region33: #{decoder_forward.8} parent=27 // pred_check
        %p280 = pneg %p72
      $region34: #{decoder_forward.8} parent=27 // pred_check_branch
        %282 = sbr.rel (%p280) target = $region36
      $region35: #{decoder_forward.8} parent=27 // pred_region
        %p283 = scmp.lt.s32.totalorder %s21, 1
        %s284 = scalar_select %p283, %s21, 1
        %s285 = smul.addr %s284, 8
        %s286 = scalar_lea.vmem %s1, %s285
      $region36: #{decoder_forward.8} parent=27 // pred_fallthru
        _
      // Predicated region
      $region37: #{decoder_forward.8} parent=27 // pred_check
        %p287 = pneg %p98
      $region38: #{decoder_forward.8} parent=27 // pred_check_branch
        %289 = sbr.rel (%p287) target = $region40
      $region39: #{decoder_forward.8} parent=27 // pred_region
        %p290 = scmp.lt.s32.totalorder %s22, 3
        %s291 = scalar_select %p290, %s22, 3
        %s292 = smul.addr %s291, 4
        %s293 = smul.addr %s292, 4
        %s294 = scalar_lea.vmem %s2, %s293
      $region40: #{decoder_forward.8} parent=27 // pred_fallthru
        _
      // Predicated region
      $region41: #{decoder_forward.8} parent=27 // pred_check
        %p295 = pneg %p124
      $region42: #{decoder_forward.8} parent=27 // pred_check_branch
        %297 = sbr.rel (%p295) target = $region44
      $region43: #{decoder_forward.8} parent=27 // pred_region
        %p298 = scmp.lt.s32.totalorder %s22, 3
        %s299 = scalar_select %p298, %s22, 3
        %s300 = scalar_lea.vmem %s3, %s299
      $region44: #{decoder_forward.8} parent=27 // pred_fallthru
        _
      // Predicated region
      $region45: #{decoder_forward.8} parent=27 // pred_check
        %p301 = pneg %p150
      $region46: #{decoder_forward.8} parent=27 // pred_check_branch
        %303 = sbr.rel (%p301) target = $region48
      $region47: #{decoder_forward.8} parent=27 // pred_region
        %p304 = scmp.lt.s32.totalorder %s22, 3
        %s305 = scalar_select %p304, %s22, 3
        %s306 = smul.addr %s305, 4
        %s307 = scalar_lea.vmem %s4, %s306
      $region48: #{decoder_forward.8} parent=27 // pred_fallthru
        _
    $region28: #{decoder_forward.8} parent=5 // pred_fallthru
      _
    %p308 = scmp.le.s32.totalorder 1, %s14
    %p309 = scmp.lt.s32.totalorder %s14, 9
    %p310 = pnand %p308, %p309
    %p311 = pneg %p310
    // Predicated region
    $region49: #{decoder_forward.8} parent=5 // pred_check
      _
    $region50: #{decoder_forward.8} parent=5 // pred_check_branch
      %313 = sbr.rel (%p310) target = $region52
    $region51: #{decoder_forward.8} parent=5 // pred_region
      %s314 = ssub.s32 %s14, 1
      %p315 = scmp.lt.s32.totalorder %s23, 1
      %s316 = scalar_select %p315, %s23, 1
      %s317 = smul.addr %s316, 8
      %s318 = scalar_lea.vmem %s0, %s317
      %p319 = pneg %p52
      %p320 = pneg %p49
      %p321 = scmp.lt.s32.totalorder %s23, 1
      %s322 = scalar_select %p321, %s23, 1
      %s323 = smul.addr %s322, 8
      %s324 = scalar_lea.vmem %s1, %s323
      %p325 = pneg %p78
      %p326 = pneg %p75
      %p327 = scmp.lt.s32.totalorder %s24, 3
      %s328 = scalar_select %p327, %s24, 3
      %s329 = smul.addr %s328, 4
      %s330 = smul.addr %s329, 4
      %s331 = scalar_lea.vmem %s2, %s330
      %p332 = pneg %p104
      %p333 = pneg %p101
      %p334 = scmp.lt.s32.totalorder %s24, 3
      %s335 = scalar_select %p334, %s24, 3
      %s336 = scalar_lea.vmem %s3, %s335
      %p337 = pneg %p130
      %p338 = pneg %p127
      %p339 = scmp.lt.s32.totalorder %s24, 3
      %s340 = scalar_select %p339, %s24, 3
      %s341 = smul.addr %s340, 4
      %s342 = scalar_lea.vmem %s4, %s341
      %p343 = pneg %p156
      %p344 = pneg %p153
      %p345 = pneg %p177
      %p346 = pneg %p174
      %p347 = pneg %p198
      %p348 = pneg %p195
      %p349 = pneg %p219
      %p350 = pneg %p216
      %p351 = pneg %p245
      %p352 = pneg %p242
      %p353 = scmp.lt.s32.totalorder %s23, 1
      %s354 = scalar_select %p353, %s23, 1
      %s355 = smul.addr %s354, 8
      %s356 = scalar_lea.vmem %s8, %s355
      %p357 = scmp.lt.s32.totalorder %s23, 1
      %s358 = scalar_select %p357, %s23, 1
      %s359 = smul.addr %s358, 8
      %s360 = scalar_lea.vmem %s0, %s359
      %p361 = scmp.lt.s32.totalorder %s23, 1
      %s362 = scalar_select %p361, %s23, 1
      %s363 = smul.addr %s362, 8
      %s364 = scalar_lea.vmem %s1, %s363
      %p365 = scmp.lt.s32.totalorder %s24, 3
      %s366 = scalar_select %p365, %s24, 3
      %s367 = smul.addr %s366, 4
      %s368 = smul.addr %s367, 4
      %s369 = scalar_lea.vmem %s2, %s368
      %p370 = scmp.lt.s32.totalorder %s24, 3
      %s371 = scalar_select %p370, %s24, 3
      %s372 = scalar_lea.vmem %s3, %s371
      %p373 = scmp.lt.s32.totalorder %s24, 3
      %s374 = scalar_select %p373, %s24, 3
      %s375 = smul.addr %s374, 4
      %s376 = scalar_lea.vmem %s4, %s375
      %p377 = scmp.lt.s32.totalorder %s23, 1
      %s378 = scalar_select %p377, %s23, 1
      %s379 = smul.addr %s378, 8
      %s380 = scalar_lea.vmem %s8, %s379
      %p382 = scmp.eq.s32.totalorder %s24, 0
      // Predicated region
      $region53: #{decoder_forward.8} parent=51 // pred_check
        %p383 = pneg %p382
      $region54: #{decoder_forward.8} parent=51 // pred_check_branch
        %385 = sbr.rel (%p383) target = $region56
      $region55: #{decoder_forward.8} parent=51 // pred_region
        %v386 = vld [vmem:[%s360] sm:$0xff]
        %v387 = vld [vmem:[%s5] sm:$0x1]
        %v389 = vlaneseq
        %v390 = vshrl.u32 %v389, 7
        %v391 = vsub.s32 0, %v390
        %v392 = vrot.slane %v387, %v391
        %v394 = vadd.f32 %v386, %v392
        %vm395 = vcmask 261120
        %396 = vst.msk [vmem:[#allocation2] sm:$0xff] %vm395, %v394
      $region56: #{decoder_forward.8} parent=51 // pred_fallthru
        _
      %v397 = vld [vmem:[%s360] sm:$0xff]
      %v398 = vpack.c.bf16 %v397, %v397
      %v399 = vld [vmem:[%s364] sm:$0xff]
      %v400 = vpack.c.bf16 %v399, %v399
      %v401 = vld [vmem:[%s369] sm:$0xf]
      %v402 = vld [vmem:[%s369 + $0x4] sm:$0xf]
      %v403 = vld [vmem:[%s369 + $0x8] sm:$0xf]
      %v404 = vld [vmem:[%s369 + $0xc] sm:$0xf]
      %v405 = vld [vmem:[%s372] sm:$0x1]
      %v407 = vlaneseq
      %v408 = vshrl.u32 %v407, 7
      %v409 = vsub.s32 0, %v408
      %v410 = vrot.slane %v405, %v409
      %v416 = vunpack.c.l.b16 %v401
      %v417 = vunpack.c.l.b16 %v402
      %v418 = vunpack.c.l.b16 %v403
      %v419 = vunpack.c.l.b16 %v404
      %v420 = vpack.c.b16 %v417, %v416
      %v421 = vpack.c.b16 %v419, %v418
      %vm424 = vcmask 261120
      %v426 = vsel %vm424, %v398, 0
      %428 = vmatprep.subr.bf16.mxu0 0
      %429 = vmatpush1.bf16.msra.mxu0 0
      %430 = vmatprep.subr.bf16.mxu0 0
      %431 = vmatpush1.bf16.msra.mxu0 0
      %432 = vmatprep.subr.bf16.mxu0 0
      %433 = vmatpush1.bf16.msra.mxu0 0
      %434 = vmatprep.subr.bf16.mxu0 0
      %435 = vmatpush1.bf16.msra.mxu0 0
      %436 = vmatprep.subr.bf16.mxu0 0
      %437 = vmatpush1.bf16.msra.mxu0 0
      %438 = vmatprep.subr.bf16.mxu0 0
      %439 = vmatpush1.bf16.msra.mxu0 0
      %440 = vmatprep.subr.bf16.mxu0 0
      %441 = vmatpush1.bf16.msra.mxu0 %v421
      %442 = vmatprep.subr.bf16.mxu0 0
      %443 = vmatpush1.bf16.msra.mxu0 %v420
      %444 = vmatprep.subr.bf16.mxu0 0
      %445 = vmatpush2.bf16.msra.mxu0 0
      %446 = vmatprep.subr.bf16.mxu0 0
      %447 = vmatpush2.bf16.msra.mxu0 0
      %448 = vmatprep.subr.bf16.mxu0 0
      %449 = vmatpush2.bf16.msra.mxu0 0
      %450 = vmatprep.subr.bf16.mxu0 0
      %451 = vmatpush2.bf16.msra.mxu0 0
      %452 = vmatprep.subr.bf16.mxu0 0
      %453 = vmatpush2.bf16.msra.mxu0 0
      %454 = vmatprep.subr.bf16.mxu0 0
      %455 = vmatpush2.bf16.msra.mxu0 0
      %456 = vmatprep.subr.bf16.mxu0 0
      %457 = vmatpush2.bf16.msra.mxu0 0
      %458 = vmatprep.subr.bf16.mxu0 0
      %459 = vmatpush2.bf16.msra.mxu0 0
      %460 = vmatprep.mubr.bf16.mxu0 0
      %461 = vmatmul.mubr.bf16.gmra.mxu0 %v426
      %v462 = vpop.f32.mrf.mxu0
      %v463 = vadd.f32 %v410, %v462
      %v464 = vpop.f32.mrf.mxu0
      %v465 = vpop.f32.mrf.mxu0
      %v466 = vpop.f32.mrf.mxu0
      %467 = vdwg.mxu0
      %v468 = vmul.f32 %v463, 0.35355338
      %469 = vrot.lane.b32.xlu0 %v420, 120
      %v470 = vpop.permute.xlu0 %469
      %471 = vrot.lane.b32.xlu0 %v421, 120
      %v472 = vpop.permute.xlu0 %471
      %475 = vrot.lane.b32.xlu0 %v410, 120
      %v476 = vpop.permute.xlu0 %475
      %v479 = vsel %vm424, %v400, 0
      %481 = vmatprep.subr.bf16.mxu0 0
      %482 = vmatpush1.bf16.msra.mxu0 0
      %483 = vmatprep.subr.bf16.mxu0 0
      %484 = vmatpush1.bf16.msra.mxu0 0
      %485 = vmatprep.subr.bf16.mxu0 0
      %486 = vmatpush1.bf16.msra.mxu0 0
      %487 = vmatprep.subr.bf16.mxu0 0
      %488 = vmatpush1.bf16.msra.mxu0 0
      %489 = vmatprep.subr.bf16.mxu0 0
      %490 = vmatpush1.bf16.msra.mxu0 0
      %491 = vmatprep.subr.bf16.mxu0 0
      %492 = vmatpush1.bf16.msra.mxu0 0
      %493 = vmatprep.subr.bf16.mxu0 0
      %494 = vmatpush1.bf16.msra.mxu0 %v472
      %495 = vmatprep.subr.bf16.mxu0 0
      %496 = vmatpush1.bf16.msra.mxu0 %v470
      %497 = vmatprep.subr.bf16.mxu0 0
      %498 = vmatpush2.bf16.msra.mxu0 0
      %499 = vmatprep.subr.bf16.mxu0 0
      %500 = vmatpush2.bf16.msra.mxu0 0
      %501 = vmatprep.subr.bf16.mxu0 0
      %502 = vmatpush2.bf16.msra.mxu0 0
      %503 = vmatprep.subr.bf16.mxu0 0
      %504 = vmatpush2.bf16.msra.mxu0 0
      %505 = vmatprep.subr.bf16.mxu0 0
      %506 = vmatpush2.bf16.msra.mxu0 0
      %507 = vmatprep.subr.bf16.mxu0 0
      %508 = vmatpush2.bf16.msra.mxu0 0
      %509 = vmatprep.subr.bf16.mxu0 0
      %510 = vmatpush2.bf16.msra.mxu0 0
      %511 = vmatprep.subr.bf16.mxu0 0
      %512 = vmatpush2.bf16.msra.mxu0 0
      %513 = vmatprep.mubr.bf16.mxu0 0
      %514 = vmatmul.mubr.bf16.gmra.mxu0 %v479
      %v515 = vpop.f32.mrf.mxu0
      %v516 = vadd.f32 %v476, %v515
      %v517 = vpop.f32.mrf.mxu0
      %v518 = vpop.f32.mrf.mxu0
      %v519 = vpop.f32.mrf.mxu0
      %520 = vdwg.mxu0
      %521 = vrot.lane.b32.xlu0 %v420, 112
      %v522 = vpop.permute.xlu0 %521
      %523 = vrot.lane.b32.xlu0 %v421, 112
      %v524 = vpop.permute.xlu0 %523
      %527 = vrot.lane.b32.xlu0 %v410, 112
      %v528 = vpop.permute.xlu0 %527
      %530 = vmatprep.subr.bf16.mxu0 0
      %531 = vmatpush1.bf16.msra.mxu0 0
      %532 = vmatprep.subr.bf16.mxu0 0
      %533 = vmatpush1.bf16.msra.mxu0 0
      %534 = vmatprep.subr.bf16.mxu0 0
      %535 = vmatpush1.bf16.msra.mxu0 0
      %536 = vmatprep.subr.bf16.mxu0 0
      %537 = vmatpush1.bf16.msra.mxu0 0
      %538 = vmatprep.subr.bf16.mxu0 0
      %539 = vmatpush1.bf16.msra.mxu0 0
      %540 = vmatprep.subr.bf16.mxu0 0
      %541 = vmatpush1.bf16.msra.mxu0 0
      %542 = vmatprep.subr.bf16.mxu0 0
      %543 = vmatpush1.bf16.msra.mxu0 %v524
      %544 = vmatprep.subr.bf16.mxu0 0
      %545 = vmatpush1.bf16.msra.mxu0 %v522
      %546 = vmatprep.subr.bf16.mxu0 0
      %547 = vmatpush2.bf16.msra.mxu0 0
      %548 = vmatprep.subr.bf16.mxu0 0
      %549 = vmatpush2.bf16.msra.mxu0 0
      %550 = vmatprep.subr.bf16.mxu0 0
      %551 = vmatpush2.bf16.msra.mxu0 0
      %552 = vmatprep.subr.bf16.mxu0 0
      %553 = vmatpush2.bf16.msra.mxu0 0
      %554 = vmatprep.subr.bf16.mxu0 0
      %555 = vmatpush2.bf16.msra.mxu0 0
      %556 = vmatprep.subr.bf16.mxu0 0
      %557 = vmatpush2.bf16.msra.mxu0 0
      %558 = vmatprep.subr.bf16.mxu0 0
      %559 = vmatpush2.bf16.msra.mxu0 0
      %560 = vmatprep.subr.bf16.mxu0 0
      %561 = vmatpush2.bf16.msra.mxu0 0
      %562 = vmatprep.mubr.bf16.mxu0 0
      %563 = vmatmul.mubr.bf16.gmra.mxu0 %v479
      %v564 = vpop.f32.mrf.mxu0
      %v565 = vadd.f32 %v528, %v564
      %v566 = vpop.f32.mrf.mxu0
      %v567 = vpop.f32.mrf.mxu0
      %v568 = vpop.f32.mrf.mxu0
      %569 = vdwg.mxu0
      %v570 = vpack.c.bf16 %v468, %v468
      %v571 = vpack.c.bf16 %v516, %v516
      %vm572 = vcmask 64512
      %v574 = vsel %vm572, %v570, 0
      %v577 = vsel %vm572, %v571, 0
      %579 = vmatprep.subr.bf16.mxu0 0
      %580 = vmatpush1.bf16.xpose.msra.mxu0 0
      %581 = vmatprep.subr.bf16.mxu0 0
      %582 = vmatpush1.bf16.xpose.msra.mxu0 0
      %583 = vmatprep.subr.bf16.mxu0 0
      %584 = vmatpush1.bf16.xpose.msra.mxu0 0
      %585 = vmatprep.subr.bf16.mxu0 0
      %586 = vmatpush1.bf16.xpose.msra.mxu0 0
      %587 = vmatprep.subr.bf16.mxu0 0
      %588 = vmatpush1.bf16.xpose.msra.mxu0 0
      %589 = vmatprep.subr.bf16.mxu0 0
      %590 = vmatpush1.bf16.xpose.msra.mxu0 0
      %591 = vmatprep.subr.bf16.mxu0 0
      %592 = vmatpush1.bf16.xpose.msra.mxu0 0
      %593 = vmatprep.subr.bf16.mxu0 0
      %594 = vmatpush1.bf16.xpose.msra.mxu0 %v577
      %595 = vmatprep.subr.bf16.mxu0 0
      %596 = vmatpush2.bf16.xpose.msra.mxu0 0
      %597 = vmatprep.subr.bf16.mxu0 0
      %598 = vmatpush2.bf16.xpose.msra.mxu0 0
      %599 = vmatprep.subr.bf16.mxu0 0
      %600 = vmatpush2.bf16.xpose.msra.mxu0 0
      %601 = vmatprep.subr.bf16.mxu0 0
      %602 = vmatpush2.bf16.xpose.msra.mxu0 0
      %603 = vmatprep.subr.bf16.mxu0 0
      %604 = vmatpush2.bf16.xpose.msra.mxu0 0
      %605 = vmatprep.subr.bf16.mxu0 0
      %606 = vmatpush2.bf16.xpose.msra.mxu0 0
      %607 = vmatprep.subr.bf16.mxu0 0
      %608 = vmatpush2.bf16.xpose.msra.mxu0 0
      %609 = vmatprep.subr.bf16.mxu0 0
      %610 = vmatpush2.bf16.xpose.msra.mxu0 0
      %611 = vmatprep.mubr.bf16.mxu0 0
      %612 = vmatmul.mubr.bf16.gmra.mxu0 %v574
      %v613 = vpop.f32.mrf.mxu0
      %v614 = vadd.f32 0.0, %v613
      %v615 = vpop.f32.mrf.mxu0
      %v616 = vpop.f32.mrf.mxu0
      %v617 = vpop.f32.mrf.mxu0
      %618 = vdwg.mxu0
      %v619 = vsel %vm572, %v614, -inf
      %620 = vmax.xlane.f32.xlu0 %v619
      %v621 = vpop.xlane.xlu0 %620
      %v622 = vsub.f32 %v614, %v621
      %v623 = vmul.f32 %v622, 1.442695
      %v624 = vpow.pop %v623
      %v625 = vsel %vm572, %v624, 0.0
      %626 = vadd.xlane.f32.xlu0 %v625
      %v627 = vpop.xlane.xlu0 %626
      %v628 = vrcp.pop %v627
      %v629 = vmul.f32 %v624, %v628
      %v630 = vpack.c.bf16 %v629, %v629
      %v631 = vpack.c.bf16 %v565, %v565
      %v633 = vsel %vm572, %v630, 0
      %vm635 = vcmask 1043456
      %v637 = vsel %vm635, %v631, 0
      %639 = vmatprep.subr.bf16.mxu0 0
      %640 = vmatpush1.bf16.msra.mxu0 0
      %641 = vmatprep.subr.bf16.mxu0 0
      %642 = vmatpush1.bf16.msra.mxu0 0
      %643 = vmatprep.subr.bf16.mxu0 0
      %644 = vmatpush1.bf16.msra.mxu0 0
      %645 = vmatprep.subr.bf16.mxu0 0
      %646 = vmatpush1.bf16.msra.mxu0 0
      %647 = vmatprep.subr.bf16.mxu0 0
      %648 = vmatpush1.bf16.msra.mxu0 0
      %649 = vmatprep.subr.bf16.mxu0 0
      %650 = vmatpush1.bf16.msra.mxu0 0
      %651 = vmatprep.subr.bf16.mxu0 0
      %652 = vmatpush1.bf16.msra.mxu0 0
      %653 = vmatprep.subr.bf16.mxu0 0
      %654 = vmatpush1.bf16.msra.mxu0 %v637
      %655 = vmatprep.subr.bf16.mxu0 0
      %656 = vmatpush2.bf16.msra.mxu0 0
      %657 = vmatprep.subr.bf16.mxu0 0
      %658 = vmatpush2.bf16.msra.mxu0 0
      %659 = vmatprep.subr.bf16.mxu0 0
      %660 = vmatpush2.bf16.msra.mxu0 0
      %661 = vmatprep.subr.bf16.mxu0 0
      %662 = vmatpush2.bf16.msra.mxu0 0
      %663 = vmatprep.subr.bf16.mxu0 0
      %664 = vmatpush2.bf16.msra.mxu0 0
      %665 = vmatprep.subr.bf16.mxu0 0
      %666 = vmatpush2.bf16.msra.mxu0 0
      %667 = vmatprep.subr.bf16.mxu0 0
      %668 = vmatpush2.bf16.msra.mxu0 0
      %669 = vmatprep.subr.bf16.mxu0 0
      %670 = vmatpush2.bf16.msra.mxu0 0
      %671 = vmatprep.mubr.bf16.mxu0 0
      %672 = vmatmul.mubr.bf16.gmra.mxu0 %v633
      %v673 = vpop.f32.mrf.mxu0
      %v674 = vadd.f32 0.0, %v673
      %v675 = vpop.f32.mrf.mxu0
      %v676 = vpop.f32.mrf.mxu0
      %v677 = vpop.f32.mrf.mxu0
      %678 = vdwg.mxu0
      %v679 = vld [vmem:[#allocation2] sm:$0xff]
      %v680 = vpack.c.bf16 %v674, %v674
      %v681 = vld [vmem:[%s376] sm:$0xf]
      %v683 = vsel %vm572, %v680, 0
      %v686 = vsel %vm635, %v681, 0
      %688 = vmatprep.subr.bf16.mxu0 0
      %689 = vmatpush1.bf16.msra.mxu0 0
      %690 = vmatprep.subr.bf16.mxu0 0
      %691 = vmatpush1.bf16.msra.mxu0 0
      %692 = vmatprep.subr.bf16.mxu0 0
      %693 = vmatpush1.bf16.msra.mxu0 0
      %694 = vmatprep.subr.bf16.mxu0 0
      %695 = vmatpush1.bf16.msra.mxu0 0
      %696 = vmatprep.subr.bf16.mxu0 0
      %697 = vmatpush1.bf16.msra.mxu0 0
      %698 = vmatprep.subr.bf16.mxu0 0
      %699 = vmatpush1.bf16.msra.mxu0 0
      %700 = vmatprep.subr.bf16.mxu0 0
      %701 = vmatpush1.bf16.msra.mxu0 0
      %702 = vmatprep.subr.bf16.mxu0 0
      %703 = vmatpush1.bf16.msra.mxu0 %v686
      %704 = vmatprep.subr.bf16.mxu0 0
      %705 = vmatpush2.bf16.msra.mxu0 0
      %706 = vmatprep.subr.bf16.mxu0 0
      %707 = vmatpush2.bf16.msra.mxu0 0
      %708 = vmatprep.subr.bf16.mxu0 0
      %709 = vmatpush2.bf16.msra.mxu0 0
      %710 = vmatprep.subr.bf16.mxu0 0
      %711 = vmatpush2.bf16.msra.mxu0 0
      %712 = vmatprep.subr.bf16.mxu0 0
      %713 = vmatpush2.bf16.msra.mxu0 0
      %714 = vmatprep.subr.bf16.mxu0 0
      %715 = vmatpush2.bf16.msra.mxu0 0
      %716 = vmatprep.subr.bf16.mxu0 0
      %717 = vmatpush2.bf16.msra.mxu0 0
      %718 = vmatprep.subr.bf16.mxu0 0
      %719 = vmatpush2.bf16.msra.mxu0 0
      %720 = vmatprep.mubr.bf16.mxu0 0
      %721 = vmatmul.mubr.bf16.gmra.mxu0 %v683
      %v722 = vpop.f32.mrf.mxu0
      %v723 = vadd.f32 0.0, %v722
      %v724 = vpop.f32.mrf.mxu0
      %v725 = vpop.f32.mrf.mxu0
      %v726 = vpop.f32.mrf.mxu0
      %727 = vdwg.mxu0
      %v728 = vadd.f32 %v679, %v723
      %729 = vst.msk [vmem:[#allocation2] sm:$0xff] %vm424, %v728
      %p730 = scmp.eq.s32.totalorder %s24, 3
      // Predicated region
      $region57: #{decoder_forward.8} parent=51 // pred_check
        %p731 = pneg %p730
      $region58: #{decoder_forward.8} parent=51 // pred_check_branch
        %733 = sbr.rel (%p731) target = $region60
      $region59: #{decoder_forward.8} parent=51 // pred_region
        %v734 = vld [vmem:[#allocation2] sm:$0xff]
        %v735 = vld [vmem:[%s6] sm:$0x1]
        %v736 = vld [vmem:[%s7] sm:$0x1]
        %v737 = vsel %vm424, %v734, 0.0
        %738 = vadd.xlane.f32.xlu0 %v737
        %v739 = vpop.xlane.xlu0 %738
        %v740 = vrcp.pop 32.0
        %v741 = vmul.f32 %v739, %v740
        %v742 = vsub.f32 %v734, %v741
        %v743 = vmul.f32 %v742, %v742
        %v744 = vsel %vm424, %v743, 0.0
        %745 = vadd.xlane.f32.xlu0 %v744
        %v746 = vpop.xlane.xlu0 %745
        %v747 = vmul.f32 %v746, %v740
        %v748 = vadd.f32 %v747, 1e-05
        %v749 = vrsqrt.pop %v748
        %v750 = vmul.f32 %v742, %v749
        %v752 = vlaneseq
        %v753 = vshrl.u32 %v752, 7
        %v754 = vsub.s32 0, %v753
        %v755 = vrot.slane %v735, %v754
        %v757 = vmul.f32 %v750, %v755
        %v759 = vlaneseq
        %v760 = vshrl.u32 %v759, 7
        %v761 = vsub.s32 0, %v760
        %v762 = vrot.slane %v736, %v761
        %v764 = vadd.f32 %v757, %v762
        %765 = vst.msk [vmem:[%s380] sm:$0xff] %vm424, %v764
      $region60: #{decoder_forward.8} parent=51 // pred_fallthru
        _
      %p766 = scmp.lt.s32.totalorder %s23, 1
      %s767 = scalar_select %p766, %s23, 1
      %s768 = smul.addr %s767, 8
      %s769 = scalar_lea.vmem %s8, %s768
      // Predicated region
      $region61: #{decoder_forward.8} parent=51 // pred_check
        %p770 = pneg %p242
      $region62: #{decoder_forward.8} parent=51 // pred_check_branch
        %772 = sbr.rel (%p770) target = $region64
      $region63: #{decoder_forward.8} parent=51 // pred_region
        _
      $region64: #{decoder_forward.8} parent=51 // pred_fallthru
        _
    $region52: #{decoder_forward.8} parent=5 // pred_fallthru
      _
    %p773 = scmp.le.s32.totalorder 2, %s14
    // Predicated region
    $region65: #{decoder_forward.8} parent=5 // pred_check
      %p774 = pneg %p773
    $region66: #{decoder_forward.8} parent=5 // pred_check_branch
      %776 = sbr.rel (%p774) target = $region68
    $region67: #{decoder_forward.8} parent=5 // pred_region
      %s777 = ssub.s32 %s14, 2
      // Predicated region
      $region69: #{decoder_forward.8} parent=67 // pred_check
        %p778 = pneg %p248
      $region70: #{decoder_forward.8} parent=67 // pred_check_branch
        %780 = sbr.rel (%p778) target = $region72
      $region71: #{decoder_forward.8} parent=67 // pred_region
        %p781 = scmp.lt.s32.totalorder %s25, 1
        %s782 = scalar_select %p781, %s25, 1
        %s783 = smul.addr %s782, 8
        %s784 = scalar_lea.vmem %s8, %s783
      $region72: #{decoder_forward.8} parent=67 // pred_fallthru
        _
    $region68: #{decoder_forward.8} parent=5 // pred_fallthru
      _
  $region6: #{decoder_forward.8} parent=0 // loop_footer
    %s18 = sadd.s32 1, %s14
  $region7: #{decoder_forward.8} parent=0 // loop_footer_branch
    %13 = sbr.rel target = $region3
  $region8: #{decoder_forward.8} parent=0 // loop_exit
    _

// kernel: decoder_forward.9
$region0: #{decoder_forward.9}
  #allocation0 [shape = 'u32[]', space=smem, size = 0x4, offset = 0x4, fixed_abs, tag = 'smem constant byte address 0x4 - core index']
  #allocation1 [shape = 'u32[144,128]{1,0:T(1,128)}', space=vmem, size = 0x12000, scoped, tag = 'internal scratch']
  #allocation2 [shape = 'f32[16,32]{1,0:T(8,128)}', space=vmem, size = 0x2000, scoped, tag = 'scratch operand']
  %s0 = inlined_call_operand.vmem [shape: f32[16,32], index: 0, kind: input, shape index: {}]
  %s1 = inlined_call_operand.vmem [shape: bf16[32,64], index: 1, kind: input, shape index: {}]
  %s2 = inlined_call_operand.vmem [shape: f32[1,64], index: 2, kind: input, shape index: {}]
  %s3 = inlined_call_operand.vmem [shape: bf16[64,32], index: 3, kind: input, shape index: {}]
  %s4 = inlined_call_operand.vmem [shape: f32[1,32], index: 4, kind: input, shape index: {}]
  %s5 = inlined_call_operand.vmem [shape: f32[1,32], index: 5, kind: input, shape index: {}]
  %s6 = inlined_call_operand.vmem [shape: f32[1,32], index: 6, kind: input, shape index: {}]
  %s7 = inlined_call_operand.vmem [shape: f32[16,32], index: 7, kind: output, shape index: {}]
  %s8 = sld [smem:[#allocation0]]
  $region46: #{decoder_forward.9} parent=0
    _
  %s10 = ssub.s32 1, %s8
  %s11 = scalar_select 0, %s10, %s8
  // Predicated region
  $region2: #{decoder_forward.9} parent=0 // pred_check
    _
  $region3: #{decoder_forward.9} parent=0 // pred_check_branch
    %13 = sbr.rel (0) target = $region5
  $region4: #{decoder_forward.9} parent=0 // pred_region
    _
  $region5: #{decoder_forward.9} parent=0 // pred_fallthru
    _
  // Predicated region
  $region6: #{decoder_forward.9} parent=0 // pred_check
    _
  $region7: #{decoder_forward.9} parent=0 // pred_check_branch
    %15 = sbr.rel (0) target = $region9
  $region8: #{decoder_forward.9} parent=0 // pred_region
    _
  $region9: #{decoder_forward.9} parent=0 // pred_fallthru
    _
  // Predicated region
  $region10: #{decoder_forward.9} parent=0 // pred_check
    _
  $region11: #{decoder_forward.9} parent=0 // pred_check_branch
    %17 = sbr.rel (0) target = $region13
  $region12: #{decoder_forward.9} parent=0 // pred_region
    _
  $region13: #{decoder_forward.9} parent=0 // pred_fallthru
    _
  // Predicated region
  $region14: #{decoder_forward.9} parent=0 // pred_check
    _
  $region15: #{decoder_forward.9} parent=0 // pred_check_branch
    %19 = sbr.rel (0) target = $region17
  $region16: #{decoder_forward.9} parent=0 // pred_region
    _
  $region17: #{decoder_forward.9} parent=0 // pred_fallthru
    _
  // Predicated region
  $region18: #{decoder_forward.9} parent=0 // pred_check
    _
  $region19: #{decoder_forward.9} parent=0 // pred_check_branch
    %21 = sbr.rel (0) target = $region21
  $region20: #{decoder_forward.9} parent=0 // pred_region
    _
  $region21: #{decoder_forward.9} parent=0 // pred_fallthru
    _
  // Predicated region
  $region22: #{decoder_forward.9} parent=0 // pred_check
    _
  $region23: #{decoder_forward.9} parent=0 // pred_check_branch
    %23 = sbr.rel (0) target = $region25
  $region24: #{decoder_forward.9} parent=0 // pred_region
    _
  $region25: #{decoder_forward.9} parent=0 // pred_fallthru
    _
  // Predicated region
  $region26: #{decoder_forward.9} parent=0 // pred_check
    _
  $region27: #{decoder_forward.9} parent=0 // pred_check_branch
    %25 = sbr.rel (0) target = $region29
  $region28: #{decoder_forward.9} parent=0 // pred_region
    _
  $region29: #{decoder_forward.9} parent=0 // pred_fallthru
    _
  %p27 = scmp.eq.s32.totalorder 0, 0
  // Predicated region
  $region30: #{decoder_forward.9} parent=0 // pred_check
    %p28 = pneg %p27
  $region31: #{decoder_forward.9} parent=0 // pred_check_branch
    %30 = sbr.rel (%p28) target = $region33
  $region32: #{decoder_forward.9} parent=0 // pred_region
    %v31 = vld [vmem:[%s0] sm:$0xff]
    %v32 = vld [vmem:[%s0 + $0x8] sm:$0xff]
    %v33 = vld [vmem:[%s4] sm:$0x1]
    %v35 = vlaneseq
    %v36 = vshrl.u32 %v35, 7
    %v37 = vsub.s32 0, %v36
    %v38 = vrot.slane %v33, %v37
    %v40 = vadd.f32 %v31, %v38
    %v41 = vadd.f32 %v32, %v38
    %vm42 = vcmask 261120
    %43 = vst.msk [vmem:[#allocation2] sm:$0xff] %vm42, %v40
    %44 = vst.msk [vmem:[#allocation2 + $0x8] sm:$0xff] %vm42, %v41
  $region33: #{decoder_forward.9} parent=0 // pred_fallthru
    _
  %v45 = vld [vmem:[%s0] sm:$0xff]
  %v46 = vld [vmem:[%s0 + $0x8] sm:$0xff]
  %v47 = vpack.c.bf16 %v46, %v45
  %v48 = vld [vmem:[%s1] sm:$0xf]
  %v49 = vld [vmem:[%s1 + $0x4] sm:$0xf]
  %v50 = vld [vmem:[%s1 + $0x8] sm:$0xf]
  %v51 = vld [vmem:[%s1 + $0xc] sm:$0xf]
  %v52 = vld [vmem:[%s2] sm:$0x1]
  %v54 = vlaneseq
  %v55 = vshrl.u32 %v54, 7
  %v56 = vsub.s32 0, %v55
  %v57 = vrot.slane %v52, %v56
  %v63 = vunpack.c.l.b16 %v48
  %v64 = vunpack.c.l.b16 %v49
  %v65 = vunpack.c.l.b16 %v50
  %v66 = vunpack.c.l.b16 %v51
  %v67 = vpack.c.b16 %v64, %v63
  %v68 = vpack.c.b16 %v66, %v65
  %vm71 = vcmask 261120
  %v73 = vsel %vm71, %v47, 0
  %75 = vmatprep.subr.bf16.mxu0 0
  %76 = vmatpush1.bf16.msra.mxu0 0
  %77 = vmatprep.subr.bf16.mxu0 0
  %78 = vmatpush1.bf16.msra.mxu0 0
  %79 = vmatprep.subr.bf16.mxu0 0
  %80 = vmatpush1.bf16.msra.mxu0 0
  %81 = vmatprep.subr.bf16.mxu0 0
  %82 = vmatpush1.bf16.msra.mxu0 0
  %83 = vmatprep.subr.bf16.mxu0 0
  %84 = vmatpush1.bf16.msra.mxu0 0
  %85 = vmatprep.subr.bf16.mxu0 0
  %86 = vmatpush1.bf16.msra.mxu0 0
  %87 = vmatprep.subr.bf16.mxu0 0
  %88 = vmatpush1.bf16.msra.mxu0 %v68
  %89 = vmatprep.subr.bf16.mxu0 0
  %90 = vmatpush1.bf16.msra.mxu0 %v67
  %91 = vmatprep.subr.bf16.mxu0 0
  %92 = vmatpush2.bf16.msra.mxu0 0
  %93 = vmatprep.subr.bf16.mxu0 0
  %94 = vmatpush2.bf16.msra.mxu0 0
  %95 = vmatprep.subr.bf16.mxu0 0
  %96 = vmatpush2.bf16.msra.mxu0 0
  %97 = vmatprep.subr.bf16.mxu0 0
  %98 = vmatpush2.bf16.msra.mxu0 0
  %99 = vmatprep.subr.bf16.mxu0 0
  %100 = vmatpush2.bf16.msra.mxu0 0
  %101 = vmatprep.subr.bf16.mxu0 0
  %102 = vmatpush2.bf16.msra.mxu0 0
  %103 = vmatprep.subr.bf16.mxu0 0
  %104 = vmatpush2.bf16.msra.mxu0 0
  %105 = vmatprep.subr.bf16.mxu0 0
  %106 = vmatpush2.bf16.msra.mxu0 0
  %107 = vmatprep.mubr.bf16.mxu0 0
  %108 = vmatmul.mubr.bf16.gmra.mxu0 %v73
  %v109 = vpop.f32.mrf.mxu0
  %v110 = vadd.f32 %v57, %v109
  %v111 = vpop.f32.mrf.mxu0
  %v112 = vpop.f32.mrf.mxu0
  %v113 = vadd.f32 %v57, %v112
  %v114 = vpop.f32.mrf.mxu0
  %115 = vdwg.mxu0
  %v116 = vmax.f32 %v110, 0.0
  %v117 = vmax.f32 %v113, 0.0
  %v118 = vld [vmem:[#allocation2] sm:$0xff]
  %v119 = vld [vmem:[#allocation2 + $0x8] sm:$0xff]
  %v120 = vpack.c.bf16 %v117, %v116
  %v121 = vld [vmem:[%s3] sm:$0xf]
  %v122 = vld [vmem:[%s3 + $0x4] sm:$0xf]
  %v123 = vld [vmem:[%s3 + $0x8] sm:$0xf]
  %v124 = vld [vmem:[%s3 + $0xc] sm:$0xf]
  %v125 = vld [vmem:[%s3 + $0x10] sm:$0xf]
  %v126 = vld [vmem:[%s3 + $0x14] sm:$0xf]
  %v127 = vld [vmem:[%s3 + $0x18] sm:$0xf]
  %v128 = vld [vmem:[%s3 + $0x1c] sm:$0xf]
  %v137 = vunpack.c.l.b16 %v121
  %v138 = vunpack.c.l.b16 %v122
  %v139 = vunpack.c.l.b16 %v123
  %v140 = vunpack.c.l.b16 %v124
  %v141 = vunpack.c.l.b16 %v125
  %v142 = vunpack.c.l.b16 %v126
  %v143 = vunpack.c.l.b16 %v127
  %v144 = vunpack.c.l.b16 %v128
  %v145 = vpack.c.b16 %v138, %v137
  %v146 = vpack.c.b16 %v140, %v139
  %v147 = vpack.c.b16 %v142, %v141
  %v148 = vpack.c.b16 %v144, %v143
  %vm153 = vcmask 523264
  %v155 = vsel %vm153, %v120, 0
  %157 = vmatprep.subr.bf16.mxu0 0
  %158 = vmatpush1.bf16.msra.mxu0 0
  %159 = vmatprep.subr.bf16.mxu0 0
  %160 = vmatpush1.bf16.msra.mxu0 0
  %161 = vmatprep.subr.bf16.mxu0 0
  %162 = vmatpush1.bf16.msra.mxu0 0
  %163 = vmatprep.subr.bf16.mxu0 0
  %164 = vmatpush1.bf16.msra.mxu0 0
  %165 = vmatprep.subr.bf16.mxu0 0
  %166 = vmatpush1.bf16.msra.mxu0 %v148
  %167 = vmatprep.subr.bf16.mxu0 0
  %168 = vmatpush1.bf16.msra.mxu0 %v147
  %169 = vmatprep.subr.bf16.mxu0 0
  %170 = vmatpush1.bf16.msra.mxu0 %v146
  %171 = vmatprep.subr.bf16.mxu0 0
  %172 = vmatpush1.bf16.msra.mxu0 %v145
  %173 = vmatprep.subr.bf16.mxu0 0
  %174 = vmatpush2.bf16.msra.mxu0 0
  %175 = vmatprep.subr.bf16.mxu0 0
  %176 = vmatpush2.bf16.msra.mxu0 0
  %177 = vmatprep.subr.bf16.mxu0 0
  %178 = vmatpush2.bf16.msra.mxu0 0
  %179 = vmatprep.subr.bf16.mxu0 0
  %180 = vmatpush2.bf16.msra.mxu0 0
  %181 = vmatprep.subr.bf16.mxu0 0
  %182 = vmatpush2.bf16.msra.mxu0 0
  %183 = vmatprep.subr.bf16.mxu0 0
  %184 = vmatpush2.bf16.msra.mxu0 0
  %185 = vmatprep.subr.bf16.mxu0 0
  %186 = vmatpush2.bf16.msra.mxu0 0
  %187 = vmatprep.subr.bf16.mxu0 0
  %188 = vmatpush2.bf16.msra.mxu0 0
  %189 = vmatprep.mubr.bf16.mxu0 0
  %190 = vmatmul.mubr.bf16.gmra.mxu0 %v155
  %v191 = vpop.f32.mrf.mxu0
  %v192 = vadd.f32 0.0, %v191
  %v193 = vpop.f32.mrf.mxu0
  %v194 = vpop.f32.mrf.mxu0
  %v195 = vadd.f32 0.0, %v194
  %v196 = vpop.f32.mrf.mxu0
  %197 = vdwg.mxu0
  %v198 = vadd.f32 %v118, %v192
  %v199 = vadd.f32 %v119, %v195
  %200 = vst.msk [vmem:[#allocation2] sm:$0xff] %vm71, %v198
  %201 = vst.msk [vmem:[#allocation2 + $0x8] sm:$0xff] %vm71, %v199
  // Predicated region
  $region34: #{decoder_forward.9} parent=0 // pred_check
    %p202 = pneg %p27
  $region35: #{decoder_forward.9} parent=0 // pred_check_branch
    %204 = sbr.rel (%p202) target = $region37
  $region36: #{decoder_forward.9} parent=0 // pred_region
    %v205 = vld [vmem:[#allocation2] sm:$0xff]
    %v206 = vld [vmem:[#allocation2 + $0x8] sm:$0xff]
    %v207 = vld [vmem:[%s5] sm:$0x1]
    %v208 = vld [vmem:[%s6] sm:$0x1]
    %v209 = vsel %vm71, %v205, 0.0
    %210 = vadd.xlane.f32.xlu0 %v209
    %v211 = vpop.xlane.xlu0 %210
    %v212 = vsel %vm71, %v206, 0.0
    %213 = vadd.xlane.f32.xlu0 %v212
    %v214 = vpop.xlane.xlu0 %213
    %v215 = vrcp.pop 32.0
    %v216 = vmul.f32 %v211, %v215
    %v217 = vmul.f32 %v214, %v215
    %v218 = vsub.f32 %v205, %v216
    %v219 = vsub.f32 %v206, %v217
    %v220 = vmul.f32 %v218, %v218
    %v221 = vmul.f32 %v219, %v219
    %v222 = vsel %vm71, %v220, 0.0
    %223 = vadd.xlane.f32.xlu0 %v222
    %v224 = vpop.xlane.xlu0 %223
    %v225 = vsel %vm71, %v221, 0.0
    %226 = vadd.xlane.f32.xlu0 %v225
    %v227 = vpop.xlane.xlu0 %226
    %v228 = vmul.f32 %v224, %v215
    %v229 = vmul.f32 %v227, %v215
    %v230 = vadd.f32 %v228, 1e-05
    %v231 = vadd.f32 %v229, 1e-05
    %v232 = vrsqrt.pop %v230
    %v233 = vrsqrt.pop %v231
    %v234 = vmul.f32 %v218, %v232
    %v235 = vmul.f32 %v219, %v233
    %v237 = vlaneseq
    %v238 = vshrl.u32 %v237, 7
    %v239 = vsub.s32 0, %v238
    %v240 = vrot.slane %v207, %v239
    %v242 = vmul.f32 %v234, %v240
    %v243 = vmul.f32 %v235, %v240
    %v245 = vlaneseq
    %v246 = vshrl.u32 %v245, 7
    %v247 = vsub.s32 0, %v246
    %v248 = vrot.slane %v208, %v247
    %v250 = vadd.f32 %v242, %v248
    %v251 = vadd.f32 %v243, %v248
    %252 = vst.msk [vmem:[%s7] sm:$0xff] %vm71, %v250
    %253 = vst.msk [vmem:[%s7 + $0x8] sm:$0xff] %vm71, %v251
  $region37: #{decoder_forward.9} parent=0 // pred_fallthru
    _
  // Predicated region
  $region38: #{decoder_forward.9} parent=0 // pred_check
    _
  $region39: #{decoder_forward.9} parent=0 // pred_check_branch
    %255 = sbr.rel (0) target = $region41
  $region40: #{decoder_forward.9} parent=0 // pred_region
    _
  $region41: #{decoder_forward.9} parent=0 // pred_fallthru
    _
  // Predicated region
  $region42: #{decoder_forward.9} parent=0 // pred_check
    _
  $region43: #{decoder_forward.9} parent=0 // pred_check_branch
    %257 = sbr.rel (0) target = $region45
  $region44: #{decoder_forward.9} parent=0 // pred_region
    _
  $region45: #{decoder_forward.9} parent=0 // pred_fallthru
    _

</llo_original>
